<compile_context>
chip_gen: v6e
topology: v6e:2x2x1
jax: 0.10.0
libtpu: 0.0.40
codegen_flags: <defaults>
</compile_context>

<pallas_src>
import functools

import jax
import jax.numpy as jnp
from jax.experimental import pallas as pl
from jax.experimental.pallas import tpu as pltpu


def _round_up(x, m):
    return (x + m - 1) // m * m


def _vmem_capacity_bytes():
    """Physical per-core VMEM, with a conservative fallback (v7x = 64 MiB)."""
    try:
        return int(pltpu.get_tpu_info().vmem_capacity_bytes)
    except Exception:
        return 64 * 1024 * 1024


def _num_tensorcores():
    """TensorCores per chip (v5e/v6e: 1, v7x: 2); conservative fallback = 1."""
    try:
        info = pltpu.get_tpu_info()
        for attr in ("num_cores", "core_count", "num_tensorcores",
                     "tensor_cores_per_chip"):
            v = getattr(info, attr, None)
            if v:
                return max(1, min(int(v), 4))
    except Exception:
        pass
    try:
        v = getattr(jax.devices()[0], "num_cores", 1)
        return max(1, min(int(v), 4))
    except Exception:
        return 1


def _softdot_kernel(h_ref, ctx_ref, mask_ref, w_in_ref, w_out_c_ref, w_out_h_ref,
                    htilde_ref, attn_ref):
    h = h_ref[...]                                   # (TB, Dq)    f32
    ctx = ctx_ref[...]                               # (TB, S, Dc) f32 or bf16
    mask = mask_ref[...]                             # (TB, S)     int32
    w_dtype = w_in_ref.dtype

    # target = linear_in(h) : (TB, Dc)  -- dense MXU matmul, f32 accumulation.
    target = jnp.dot(h.astype(w_dtype), w_in_ref[...],
                     preferred_element_type=jnp.float32)

    # attn logits = bmm(context, target.unsqueeze(2)).squeeze(2) : (TB, S)
    # Context is the MXU LHS (M=S_pad, K=Dc) contracting its minor dim, so the
    # big context tile is consumed in its natural layout; only the tiny (1, Dc)
    # target column gets reoriented, and the (S_pad, 1) result is squeezed.
    logits = jnp.einsum('bkd,bqd->bkq', ctx,
                        target[:, None, :].astype(ctx.dtype),
                        preferred_element_type=jnp.float32)[:, :, 0]

    # masked_fill_(mask, -inf): large finite negative keeps fully-masked rows
    # (and the padded tail of S) NaN-free (uniform prob instead of NaN).
    logits = jnp.where(mask != 0, jnp.float32(-1e30), logits)

    # Softmax over the sequence dim in f32; exact normalization because attn is
    # a returned probability output (approx reciprocal left rows off by ~1e-3).
    m = jnp.max(logits, axis=-1, keepdims=True)
    e = jnp.exp(logits - m)
    denom = jnp.sum(e, axis=-1, keepdims=True)
    attn = e / denom
    attn_ref[...] = attn.astype(attn_ref.dtype)

    # weighted_context = bmm(attn3, context).squeeze(1) : (TB, Dc)
    # attn (1, S_pad) contracts its minor dim, ctx contracts its major dim --
    # both natural MXU orientations, no transpose of the context tile.
    weighted = jnp.einsum('bqk,bkd->bqd', attn[:, None, :].astype(ctx.dtype), ctx,
                          preferred_element_type=jnp.float32)[:, 0, :]

    # h_tilde = tanh(linear_out(cat(weighted_context, h)))
    #         = tanh(weighted @ W_out.T[:Dc] + h @ W_out.T[Dc:])  (lane-dense out)
    out = jnp.tanh(
        jnp.dot(weighted.astype(w_dtype), w_out_c_ref[...],
                preferred_element_type=jnp.float32)
        + jnp.dot(h.astype(w_dtype), w_out_h_ref[...],
                  preferred_element_type=jnp.float32))
    htilde_ref[...] = out.astype(htilde_ref.dtype)


def prepare_soft_dot_weights(w_in, w_out, dtype=jnp.bfloat16):
    """One-time weight prep, hoisted out of the per-step call path.

    w_in  : (Dc, Dq)       -- torch linear_in.weight
    w_out : (Dq, Dq + Dc)  -- torch linear_out.weight
    Splitting linear_out avoids an in-kernel concat:
        cat(wc, h) @ W_out.T == wc @ W_out.T[:Dc] + h @ W_out.T[Dc:]
    The output dim is zero-padded to a multiple of 128 so the h_tilde store is a
    full-lane (unmasked) vst; the wrapper slices the padding back off.

    bf16 (the default) is recommended on ALL generations: the kernel is HBM
    bandwidth bound, bf16 halves the dominant context/weight streams, and all
    accumulation stays in f32 inside the kernel.
    """
    Dc, Dq = w_in.shape
    Dq_pad = max(_round_up(Dq, 128), 128)
    w_in_t = jnp.asarray(w_in, dtype).T                     # (Dq, Dc)
    w_out_t = jnp.asarray(w_out, dtype).T                   # (Dq + Dc, Dq)
    pad = ((0, 0), (0, Dq_pad - Dq))
    w_out_c = jnp.pad(w_out_t[:Dc], pad)                    # (Dc, Dq_pad)
    w_out_h = jnp.pad(w_out_t[Dc:], pad)                    # (Dq, Dq_pad)
    return w_in_t, w_out_c, w_out_h


@functools.partial(jax.jit, static_argnames=("block_b",))
def _soft_dot_attention_padded(h, context, mask, w_in_t, w_out_c, w_out_h, *,
                               block_b):
    B, Dq = h.shape
    _, S, Dc = context.shape
    Dq_pad = w_out_c.shape[1]
    ctx_dtype = context.dtype
    w_dtype = w_in_t.dtype

    # Lane-dense sequence dim (padded tail is masked below).
    S_pad = max(_round_up(S, 128), 128)

    vmem_cap = _vmem_capacity_bytes()
    num_tc = _num_tensorcores()

    # Full per-batch-row VMEM footprint (x2 = double-buffered pipeline stages).
    ctx_esz = jnp.dtype(ctx_dtype).itemsize
    row_bytes = 2 * (S_pad * Dc * ctx_esz        # context tile
                     + Dq * 4                    # h tile
                     + S_pad * 4                 # mask tile (int32)
                     + Dq_pad * 4                # h_tilde output tile
                     + S_pad * 4)                # attn output tile
    # TODO(synk): carry the mask as int8 (4x fewer bytes) once narrow-dtype
    # sublane windows are verified on the target Mosaic build.
    w_bytes = (Dq * Dc + Dc * Dq_pad + Dq * Dq_pad) * jnp.dtype(w_dtype).itemsize
    fixed_bytes = 2 * w_bytes                    # weights are double-buffered too
    headroom = 12 * 1024 * 1024                  # Mosaic internal scratch etc.

    # Batch tile from the FULL footprint, so v7x (64 MiB) never overshoots.
    budget = max(vmem_cap - headroom - fixed_bytes, row_bytes * 8)
    tb_vmem = max((budget // row_bytes) // 8 * 8, 8)

    B_pad = _round_up(B, 8)
    # >= 2 pipelined grid steps per TensorCore whenever the batch allows it, so
    # the context DMA overlaps compute and both v7x TCs get work.
    min_steps = 2 * num_tc
    tb_overlap = max(_round_up((B_pad + min_steps - 1) // min_steps, 8), 8)

    tb = min(max(block_b // 8 * 8, 8), tb_vmem, tb_overlap, B_pad)
    tb = max(tb, 8)
    B_pad = _round_up(B_pad, tb)

    # Explicit scoped-VMEM budget, capped below physical VMEM with headroom.
    need = tb * row_bytes + fixed_bytes + headroom
    vmem_limit = int(min(max(need, 32 * 1024 * 1024),
                         max(vmem_cap - headroom, 32 * 1024 * 1024)))
    # TODO(synk): for huge S*Dc where even tb=8 exceeds the v7x budget, add a
    # trailing "arbitrary" grid axis over S with flash-style online softmax.

    # Pad inputs; padded rows/cols are zero and fully masked.
    h_p = jnp.pad(h, ((0, B_pad - B), (0, 0)))
    ctx_p = jnp.pad(context, ((0, B_pad - B), (0, S_pad - S), (0, 0)))
    mask_p = jnp.pad(mask, ((0, B_pad - B), (0, S_pad - S)), constant_values=1)

    h_tilde_p, attn_p = pl.pallas_call(
        _softdot_kernel,
        grid=(B_pad // tb,),
        in_specs=[
            pl.BlockSpec((tb, Dq), lambda i: (i, 0)),            # h
            pl.BlockSpec((tb, S_pad, Dc), lambda i: (i, 0, 0)),  # context
            pl.BlockSpec((tb, S_pad), lambda i: (i, 0)),         # mask
            # Constant index maps -> weights stay VMEM-resident across the grid.
            # (single-buffering them via pl.Buffered(1) would save ~w_bytes more
            #  on v7x; kept default-buffered here for portability.)
            pl.BlockSpec((Dq, Dc), lambda i: (0, 0)),            # w_in_t
            pl.BlockSpec((Dc, Dq_pad), lambda i: (0, 0)),        # w_out_c
            pl.BlockSpec((Dq, Dq_pad), lambda i: (0, 0)),        # w_out_h
        ],
        out_specs=[
            pl.BlockSpec((tb, Dq_pad), lambda i: (i, 0)),        # h_tilde (lane-dense)
            pl.BlockSpec((tb, S_pad), lambda i: (i, 0)),         # attn    (lane-dense)
        ],
        out_shape=[
            jax.ShapeDtypeStruct((B_pad, Dq_pad), jnp.float32),
            jax.ShapeDtypeStruct((B_pad, S_pad), jnp.float32),
        ],
        compiler_params=pltpu.CompilerParams(
            dimension_semantics=("parallel",),   # batch-parallel -> megacore on v7x
            vmem_limit_bytes=vmem_limit),
    )(h_p, ctx_p, mask_p, w_in_t, w_out_c, w_out_h)

    return h_tilde_p[:B, :Dq], attn_p[:B, :S]


def soft_dot_attention(h, context, prepared_weights, mask=None, *, block_b=512):
    """SoftDotAttention.forward (output_tilde=True, output_prob=True).

    h        : (B, Dq) float32
    context  : (B, S, Dc).  bfloat16 is recommended on ALL TPU generations
               (the kernel is HBM-bound; bf16 halves the dominant stream).
    prepared_weights : output of prepare_soft_dot_weights()
    mask     : optional (B, S) bool/int, True -> masked (-inf) before softmax
    returns (h_tilde (B, Dq) f32, attn (B, S) f32)

    Note: fully-masked rows yield a finite uniform distribution over S_pad
    columns (real columns sum to S/S_pad), whereas the PyTorch reference
    produces NaN for such rows.
    """
    B, S = context.shape[0], context.shape[1]
    if mask is None:
        mask_arr = jnp.zeros((B, S), jnp.int32)
    else:
        mask_arr = jnp.asarray(mask).astype(jnp.int32)
    w_in_t, w_out_c, w_out_h = prepared_weights
    # TODO(synk): output_tilde=False / output_prob=False variants are trivial
    # wrapper changes (return weighted_context / raw logits) and are not exposed.
    return _soft_dot_attention_padded(
        jnp.asarray(h, jnp.float32), context, mask_arr,
        w_in_t, w_out_c, w_out_h, block_b=block_b)


def _reference(h, context, w_in, w_out, mask=None):
    target = h @ w_in.T                                   # (B, Dc)
    logits = jnp.einsum('bsd,bd->bs', context, target)    # (B, S)
    if mask is not None:
        logits = jnp.where(mask, -jnp.inf, logits)
    attn = jax.nn.softmax(logits, axis=-1)
    weighted = jnp.einsum('bs,bsd->bd', attn, context)    # (B, Dc)
    h_tilde = jnp.tanh(jnp.concatenate([weighted, h], axis=1) @ w_out.T)
    return h_tilde, attn


if __name__ == "__main__":
    B, S, Dq, Dc = 4, 8, 32, 48
    key = jax.random.PRNGKey(0)
    k_h, k_ctx, k_win, k_wout, k_m = jax.random.split(key, 5)

    h = jax.random.normal(k_h, (B, Dq), jnp.float32)
    context = jax.random.normal(k_ctx, (B, S, Dc), jnp.float32)
    # Deterministic synthetic parameters (shapes follow nn.Linear in __init__).
    w_in = jax.random.normal(k_win, (Dc, Dq), jnp.float32) * 0.1          # linear_in.weight
    w_out = jax.random.normal(k_wout, (Dq, Dq + Dc), jnp.float32) * 0.1   # linear_out.weight
    mask = jax.random.uniform(k_m, (B, S)) < 0.25
    mask = mask.at[:, 0].set(False)   # keep >=1 unmasked entry per row (ref NaNs otherwise)

    ref_h, ref_a = _reference(h, context, w_in, w_out, mask=mask)
    ref_h2, ref_a2 = _reference(h, context, w_in, w_out, mask=None)

    # Exactness check: f32 weights + f32 context.
    weights_f32 = prepare_soft_dot_weights(w_in, w_out, dtype=jnp.float32)
    h_tilde, attn = soft_dot_attention(h, context, weights_f32, mask=mask)
    jax.block_until_ready((h_tilde, attn))
    assert jnp.allclose(h_tilde, ref_h, atol=5e-3, rtol=5e-3), "h_tilde mismatch (f32/mask)"
    assert jnp.allclose(attn, ref_a, atol=5e-3, rtol=5e-3), "attn mismatch (f32/mask)"

    h_tilde2, attn2 = soft_dot_attention(h, context, weights_f32, mask=None)
    jax.block_until_ready((h_tilde2, attn2))
    assert jnp.allclose(h_tilde2, ref_h2, atol=5e-3, rtol=5e-3), "h_tilde mismatch (f32)"
    assert jnp.allclose(attn2, ref_a2, atol=5e-3, rtol=5e-3), "attn mismatch (f32)"

    # Recommended path on all generations: bf16 context + bf16 weights
    # (f32 accumulation inside; bf16 rounding widens the tolerance).
    weights_bf16 = prepare_soft_dot_weights(w_in, w_out)   # default dtype = bf16
    h_tilde3, attn3 = soft_dot_attention(
        h, context.astype(jnp.bfloat16), weights_bf16, mask=mask)
    jax.block_until_ready((h_tilde3, attn3))
    assert jnp.allclose(h_tilde3, ref_h, atol=1e-1, rtol=1e-1), "h_tilde mismatch (bf16)"
    assert jnp.allclose(attn3, ref_a, atol=1e-1, rtol=1e-1), "attn mismatch (bf16)"

    print("KERNEL_OK")
</pallas_src>

<mosaic_0001>
module attributes {stable_mosaic.version = 11 : i64} {
  func.func @_softdot_kernel(%arg0: i32, %arg1: memref<8x32xf32, #tpu.memory_space<vmem>>, %arg2: memref<8x128x48xf32, #tpu.memory_space<vmem>>, %arg3: memref<8x128xi32, #tpu.memory_space<vmem>>, %arg4: memref<32x48xf32, #tpu.memory_space<vmem>>, %arg5: memref<48x128xf32, #tpu.memory_space<vmem>>, %arg6: memref<32x128xf32, #tpu.memory_space<vmem>>, %arg7: memref<8x128xf32, #tpu.memory_space<vmem>>, %arg8: memref<8x128xf32, #tpu.memory_space<vmem>>) attributes {dimension_semantics = [#tpu.dimension_semantics<parallel>], iteration_bounds = array<i64: 1>, scalar_prefetch = 0 : i64, scratch_operands = 0 : i64, tpu.core_type = #tpu.core_type<tc>, window_params = [{transform_indices = @transform_0, window_bounds = array<i64: 8, 32>}, {transform_indices = @transform_1, window_bounds = array<i64: 8, 128, 48>}, {transform_indices = @transform_2, window_bounds = array<i64: 8, 128>}, {pipeline_mode = #tpu.pipeline_mode<synchronous>, transform_indices = @transform_3, window_bounds = array<i64: 32, 48>}, {pipeline_mode = #tpu.pipeline_mode<synchronous>, transform_indices = @transform_4, window_bounds = array<i64: 48, 128>}, {pipeline_mode = #tpu.pipeline_mode<synchronous>, transform_indices = @transform_5, window_bounds = array<i64: 32, 128>}, {transform_indices = @transform_6, window_bounds = array<i64: 8, 128>}, {transform_indices = @transform_7, window_bounds = array<i64: 8, 128>}]} {
    %c0 = arith.constant 0 : index
    %c0_0 = arith.constant 0 : index
    %0 = vector.load %arg1[%c0, %c0_0] : memref<8x32xf32, #tpu.memory_space<vmem>>, vector<8x32xf32>
    %c0_1 = arith.constant 0 : index
    %c0_2 = arith.constant 0 : index
    %c0_3 = arith.constant 0 : index
    %1 = vector.load %arg2[%c0_1, %c0_2, %c0_3] : memref<8x128x48xf32, #tpu.memory_space<vmem>>, vector<8x128x48xf32>
    %c0_4 = arith.constant 0 : index
    %c0_5 = arith.constant 0 : index
    %2 = vector.load %arg3[%c0_4, %c0_5] : memref<8x128xi32, #tpu.memory_space<vmem>>, vector<8x128xi32>
    %c0_6 = arith.constant 0 : index
    %c0_7 = arith.constant 0 : index
    %3 = vector.load %arg4[%c0_6, %c0_7] : memref<32x48xf32, #tpu.memory_space<vmem>>, vector<32x48xf32>
    %cst = arith.constant dense<0.000000e+00> : vector<8x48xf32>
    %4 = tpu.matmul %0, %3, %cst {dimension_numbers = #tpu.dot_dimension_numbers<[1], [0], [0], [1], [0, 0, 1, 1], [], []>} : vector<8x32xf32>, vector<32x48xf32>, vector<8x48xf32> -> vector<8x48xf32>
    %5 = vector.shape_cast %4 : vector<8x48xf32> to vector<8x1x48xf32>
    "tpu.trace_start"() <{level = 10 : i32, message = "bkd,bqd->bkq"}> : () -> ()
    %cst_8 = arith.constant dense<0.000000e+00> : vector<8x128x1xf32>
    %6 = tpu.matmul %1, %5, %cst_8 {dimension_numbers = #tpu.dot_dimension_numbers<[2], [2], [1], [1], [0, 0, 0, 1, 1, 1], [0], [0]>} : vector<8x128x48xf32>, vector<8x1x48xf32>, vector<8x128x1xf32> -> vector<8x128x1xf32>
    "tpu.trace_stop"() : () -> ()
    %7 = vector.shape_cast %6 : vector<8x128x1xf32> to vector<8x128xf32>
    %c0_i32 = arith.constant 0 : i32
    %8 = vector.broadcast %c0_i32 : i32 to vector<8x128xi32>
    %9 = arith.cmpi ne, %2, %8 : vector<8x128xi32>
    %cst_9 = arith.constant -1.000000e+30 : f32
    %10 = vector.broadcast %cst_9 : f32 to vector<8x128xf32>
    %11 = arith.select %9, %10, %7 : vector<8x128xi1>, vector<8x128xf32>
    %cst_10 = arith.constant dense<0xFF800000> : vector<8xf32>
    %12 = vector.multi_reduction <maximumf>, %11, %cst_10 [1] : vector<8x128xf32> to vector<8xf32>
    %13 = vector.shape_cast %12 : vector<8xf32> to vector<8x1xf32>
    %14 = vector.broadcast %13 : vector<8x1xf32> to vector<8x128xf32>
    %15 = arith.subf %11, %14 : vector<8x128xf32>
    %16 = math.exp %15 : vector<8x128xf32>
    %cst_11 = arith.constant dense<0.000000e+00> : vector<8xf32>
    %17 = vector.multi_reduction <add>, %16, %cst_11 [1] : vector<8x128xf32> to vector<8xf32>
    %18 = vector.shape_cast %17 : vector<8xf32> to vector<8x1xf32>
    %19 = vector.broadcast %18 : vector<8x1xf32> to vector<8x128xf32>
    %20 = arith.divf %16, %19 : vector<8x128xf32>
    %c0_12 = arith.constant 0 : index
    %c0_13 = arith.constant 0 : index
    %21 = vector.load %arg8[%c0_12, %c0_13] : memref<8x128xf32, #tpu.memory_space<vmem>>, vector<8x128xf32>
    tpu.vector_store %arg8[%c0_12, %c0_13], %20 {strides = array<i32>} : memref<8x128xf32, #tpu.memory_space<vmem>>, vector<8x128xf32>,
    %22 = vector.shape_cast %20 : vector<8x128xf32> to vector<8x1x128xf32>
    "tpu.trace_start"() <{level = 10 : i32, message = "bqk,bkd->bqd"}> : () -> ()
    %cst_14 = arith.constant dense<0.000000e+00> : vector<8x1x48xf32>
    %23 = tpu.matmul %22, %1, %cst_14 {dimension_numbers = #tpu.dot_dimension_numbers<[2], [1], [1], [2], [0, 0, 0, 1, 1, 2], [0], [0]>} : vector<8x1x128xf32>, vector<8x128x48xf32>, vector<8x1x48xf32> -> vector<8x1x48xf32>
    "tpu.trace_stop"() : () -> ()
    %24 = vector.shape_cast %23 : vector<8x1x48xf32> to vector<8x48xf32>
    %c0_15 = arith.constant 0 : index
    %c0_16 = arith.constant 0 : index
    %25 = vector.load %arg5[%c0_15, %c0_16] : memref<48x128xf32, #tpu.memory_space<vmem>>, vector<48x128xf32>
    %cst_17 = arith.constant dense<0.000000e+00> : vector<8x128xf32>
    %26 = tpu.matmul %24, %25, %cst_17 {dimension_numbers = #tpu.dot_dimension_numbers<[1], [0], [0], [1], [0, 0, 1, 1], [], []>} : vector<8x48xf32>, vector<48x128xf32>, vector<8x128xf32> -> vector<8x128xf32>
    %c0_18 = arith.constant 0 : index
    %c0_19 = arith.constant 0 : index
    %27 = vector.load %arg6[%c0_18, %c0_19] : memref<32x128xf32, #tpu.memory_space<vmem>>, vector<32x128xf32>
    %cst_20 = arith.constant dense<0.000000e+00> : vector<8x128xf32>
    %28 = tpu.matmul %0, %27, %cst_20 {dimension_numbers = #tpu.dot_dimension_numbers<[1], [0], [0], [1], [0, 0, 1, 1], [], []>} : vector<8x32xf32>, vector<32x128xf32>, vector<8x128xf32> -> vector<8x128xf32>
    %29 = arith.addf %26, %28 : vector<8x128xf32>
    %30 = math.tanh %29 : vector<8x128xf32>
    %c0_21 = arith.constant 0 : index
    %c0_22 = arith.constant 0 : index
    %31 = vector.load %arg7[%c0_21, %c0_22] : memref<8x128xf32, #tpu.memory_space<vmem>>, vector<8x128xf32>
    tpu.vector_store %arg7[%c0_21, %c0_22], %30 {strides = array<i32>} : memref<8x128xf32, #tpu.memory_space<vmem>>, vector<8x128xf32>,
    return
  }
  func.func @transform_0(%arg0: i32) -> (i32, i32) {
    %c0_i32 = arith.constant 0 : i32
    %c0_i32_0 = arith.constant 0 : i32
    return %arg0, %c0_i32 : i32, i32
  }
  func.func @transform_1(%arg0: i32) -> (i32, i32, i32) {
    %c0_i32 = arith.constant 0 : i32
    %c0_i32_0 = arith.constant 0 : i32
    %c0_i32_1 = arith.constant 0 : i32
    return %arg0, %c0_i32, %c0_i32_0 : i32, i32, i32
  }
  func.func @transform_2(%arg0: i32) -> (i32, i32) {
    %c0_i32 = arith.constant 0 : i32
    %c0_i32_0 = arith.constant 0 : i32
    return %arg0, %c0_i32 : i32, i32
  }
  func.func @transform_3(%arg0: i32) -> (i32, i32) {
    %c0_i32 = arith.constant 0 : i32
    %c0_i32_0 = arith.constant 0 : i32
    %c0_i32_1 = arith.constant 0 : i32
    return %c0_i32, %c0_i32_0 : i32, i32
  }
  func.func @transform_4(%arg0: i32) -> (i32, i32) {
    %c0_i32 = arith.constant 0 : i32
    %c0_i32_0 = arith.constant 0 : i32
    %c0_i32_1 = arith.constant 0 : i32
    return %c0_i32, %c0_i32_0 : i32, i32
  }
  func.func @transform_5(%arg0: i32) -> (i32, i32) {
    %c0_i32 = arith.constant 0 : i32
    %c0_i32_0 = arith.constant 0 : i32
    %c0_i32_1 = arith.constant 0 : i32
    return %c0_i32, %c0_i32_0 : i32, i32
  }
  func.func @transform_6(%arg0: i32) -> (i32, i32) {
    %c0_i32 = arith.constant 0 : i32
    %c0_i32_0 = arith.constant 0 : i32
    return %arg0, %c0_i32 : i32, i32
  }
  func.func @transform_7(%arg0: i32) -> (i32, i32) {
    %c0_i32 = arith.constant 0 : i32
    %c0_i32_0 = arith.constant 0 : i32
    return %arg0, %c0_i32 : i32, i32
  }
}

</mosaic_0001>

<llo_original>
// kernel: _soft_dot_attention_padded.1
$region0: #{_soft_dot_attention_padded.1}
  #allocation0 [shape = 'u32[]', space=smem, size = 0x4, offset = 0x4, fixed_abs, tag = 'smem constant byte address 0x4 - core index']
  #allocation1 [shape = 'u32[144,128]{1,0:T(1,128)}', space=vmem, size = 0x12000, scoped, tag = 'internal scratch']
  %s0 = inlined_call_operand.vmem [shape: f32[8,32], index: 0, kind: input, shape index: {}]
  %s1 = inlined_call_operand.vmem [shape: f32[8,128,48], index: 1, kind: input, shape index: {}]
  %s2 = inlined_call_operand.vmem [shape: s32[8,128], index: 2, kind: input, shape index: {}]
  %s3 = inlined_call_operand.vmem [shape: f32[32,48], index: 3, kind: input, shape index: {}]
  %s4 = inlined_call_operand.vmem [shape: f32[48,128], index: 4, kind: input, shape index: {}]
  %s5 = inlined_call_operand.vmem [shape: f32[32,128], index: 5, kind: input, shape index: {}]
  %s6 = inlined_call_operand.vmem [shape: f32[8,128], index: 6, kind: output, shape index: {0}]
  %s7 = inlined_call_operand.vmem [shape: f32[8,128], index: 7, kind: output, shape index: {1}]
  %8 = xla_tuple %s6, %s7
  %s9 = sld [smem:[#allocation0]]
  $region42: #{_soft_dot_attention_padded.1} parent=0
    _
  %s11 = ssub.s32 1, %s9
  %s12 = scalar_select 0, %s11, %s9
  // Predicated region
  $region2: #{_soft_dot_attention_padded.1} parent=0 // pred_check
    _
  $region3: #{_soft_dot_attention_padded.1} parent=0 // pred_check_branch
    %14 = sbr.rel (0) target = $region5
  $region4: #{_soft_dot_attention_padded.1} parent=0 // pred_region
    _
  $region5: #{_soft_dot_attention_padded.1} parent=0 // pred_fallthru
    _
  // Predicated region
  $region6: #{_soft_dot_attention_padded.1} parent=0 // pred_check
    _
  $region7: #{_soft_dot_attention_padded.1} parent=0 // pred_check_branch
    %16 = sbr.rel (0) target = $region9
  $region8: #{_soft_dot_attention_padded.1} parent=0 // pred_region
    _
  $region9: #{_soft_dot_attention_padded.1} parent=0 // pred_fallthru
    _
  // Predicated region
  $region10: #{_soft_dot_attention_padded.1} parent=0 // pred_check
    _
  $region11: #{_soft_dot_attention_padded.1} parent=0 // pred_check_branch
    %18 = sbr.rel (0) target = $region13
  $region12: #{_soft_dot_attention_padded.1} parent=0 // pred_region
    _
  $region13: #{_soft_dot_attention_padded.1} parent=0 // pred_fallthru
    _
  // Predicated region
  $region14: #{_soft_dot_attention_padded.1} parent=0 // pred_check
    _
  $region15: #{_soft_dot_attention_padded.1} parent=0 // pred_check_branch
    %20 = sbr.rel (0) target = $region17
  $region16: #{_soft_dot_attention_padded.1} parent=0 // pred_region
    _
  $region17: #{_soft_dot_attention_padded.1} parent=0 // pred_fallthru
    _
  // Predicated region
  $region18: #{_soft_dot_attention_padded.1} parent=0 // pred_check
    _
  $region19: #{_soft_dot_attention_padded.1} parent=0 // pred_check_branch
    %22 = sbr.rel (0) target = $region21
  $region20: #{_soft_dot_attention_padded.1} parent=0 // pred_region
    _
  $region21: #{_soft_dot_attention_padded.1} parent=0 // pred_fallthru
    _
  // Predicated region
  $region22: #{_soft_dot_attention_padded.1} parent=0 // pred_check
    _
  $region23: #{_soft_dot_attention_padded.1} parent=0 // pred_check_branch
    %24 = sbr.rel (0) target = $region25
  $region24: #{_soft_dot_attention_padded.1} parent=0 // pred_region
    _
  $region25: #{_soft_dot_attention_padded.1} parent=0 // pred_fallthru
    _
  %v25 = vld [vmem:[%s0] sm:$0xff]
  %v26 = vld [vmem:[%s1] sm:$0xff]
  %v27 = vld [vmem:[%s1 + $0x8] sm:$0xff]
  %v28 = vld [vmem:[%s1 + $0x10] sm:$0xff]
  %v29 = vld [vmem:[%s1 + $0x18] sm:$0xff]
  %v30 = vld [vmem:[%s1 + $0x20] sm:$0xff]
  %v31 = vld [vmem:[%s1 + $0x28] sm:$0xff]
  %v32 = vld [vmem:[%s1 + $0x30] sm:$0xff]
  %v33 = vld [vmem:[%s1 + $0x38] sm:$0xff]
  %v34 = vld [vmem:[%s1 + $0x40] sm:$0xff]
  %v35 = vld [vmem:[%s1 + $0x48] sm:$0xff]
  %v36 = vld [vmem:[%s1 + $0x50] sm:$0xff]
  %v37 = vld [vmem:[%s1 + $0x58] sm:$0xff]
  %v38 = vld [vmem:[%s1 + $0x60] sm:$0xff]
  %v39 = vld [vmem:[%s1 + $0x68] sm:$0xff]
  %v40 = vld [vmem:[%s1 + $0x70] sm:$0xff]
  %v41 = vld [vmem:[%s1 + $0x78] sm:$0xff]
  %v42 = vld [vmem:[%s1 + $0x80] sm:$0xff]
  %v43 = vld [vmem:[%s1 + $0x88] sm:$0xff]
  %v44 = vld [vmem:[%s1 + $0x90] sm:$0xff]
  %v45 = vld [vmem:[%s1 + $0x98] sm:$0xff]
  %v46 = vld [vmem:[%s1 + $0xa0] sm:$0xff]
  %v47 = vld [vmem:[%s1 + $0xa8] sm:$0xff]
  %v48 = vld [vmem:[%s1 + $0xb0] sm:$0xff]
  %v49 = vld [vmem:[%s1 + $0xb8] sm:$0xff]
  %v50 = vld [vmem:[%s1 + $0xc0] sm:$0xff]
  %v51 = vld [vmem:[%s1 + $0xc8] sm:$0xff]
  %v52 = vld [vmem:[%s1 + $0xd0] sm:$0xff]
  %v53 = vld [vmem:[%s1 + $0xd8] sm:$0xff]
  %v54 = vld [vmem:[%s1 + $0xe0] sm:$0xff]
  %v55 = vld [vmem:[%s1 + $0xe8] sm:$0xff]
  %v56 = vld [vmem:[%s1 + $0xf0] sm:$0xff]
  %v57 = vld [vmem:[%s1 + $0xf8] sm:$0xff]
  %v58 = vld [vmem:[%s1 + $0x100] sm:$0xff]
  %v59 = vld [vmem:[%s1 + $0x108] sm:$0xff]
  %v60 = vld [vmem:[%s1 + $0x110] sm:$0xff]
  %v61 = vld [vmem:[%s1 + $0x118] sm:$0xff]
  %v62 = vld [vmem:[%s1 + $0x120] sm:$0xff]
  %v63 = vld [vmem:[%s1 + $0x128] sm:$0xff]
  %v64 = vld [vmem:[%s1 + $0x130] sm:$0xff]
  %v65 = vld [vmem:[%s1 + $0x138] sm:$0xff]
  %v66 = vld [vmem:[%s1 + $0x140] sm:$0xff]
  %v67 = vld [vmem:[%s1 + $0x148] sm:$0xff]
  %v68 = vld [vmem:[%s1 + $0x150] sm:$0xff]
  %v69 = vld [vmem:[%s1 + $0x158] sm:$0xff]
  %v70 = vld [vmem:[%s1 + $0x160] sm:$0xff]
  %v71 = vld [vmem:[%s1 + $0x168] sm:$0xff]
  %v72 = vld [vmem:[%s1 + $0x170] sm:$0xff]
  %v73 = vld [vmem:[%s1 + $0x178] sm:$0xff]
  %v74 = vld [vmem:[%s1 + $0x180] sm:$0xff]
  %v75 = vld [vmem:[%s1 + $0x188] sm:$0xff]
  %v76 = vld [vmem:[%s1 + $0x190] sm:$0xff]
  %v77 = vld [vmem:[%s1 + $0x198] sm:$0xff]
  %v78 = vld [vmem:[%s1 + $0x1a0] sm:$0xff]
  %v79 = vld [vmem:[%s1 + $0x1a8] sm:$0xff]
  %v80 = vld [vmem:[%s1 + $0x1b0] sm:$0xff]
  %v81 = vld [vmem:[%s1 + $0x1b8] sm:$0xff]
  %v82 = vld [vmem:[%s1 + $0x1c0] sm:$0xff]
  %v83 = vld [vmem:[%s1 + $0x1c8] sm:$0xff]
  %v84 = vld [vmem:[%s1 + $0x1d0] sm:$0xff]
  %v85 = vld [vmem:[%s1 + $0x1d8] sm:$0xff]
  %v86 = vld [vmem:[%s1 + $0x1e0] sm:$0xff]
  %v87 = vld [vmem:[%s1 + $0x1e8] sm:$0xff]
  %v88 = vld [vmem:[%s1 + $0x1f0] sm:$0xff]
  %v89 = vld [vmem:[%s1 + $0x1f8] sm:$0xff]
  %v90 = vld [vmem:[%s1 + $0x200] sm:$0xff]
  %v91 = vld [vmem:[%s1 + $0x208] sm:$0xff]
  %v92 = vld [vmem:[%s1 + $0x210] sm:$0xff]
  %v93 = vld [vmem:[%s1 + $0x218] sm:$0xff]
  %v94 = vld [vmem:[%s1 + $0x220] sm:$0xff]
  %v95 = vld [vmem:[%s1 + $0x228] sm:$0xff]
  %v96 = vld [vmem:[%s1 + $0x230] sm:$0xff]
  %v97 = vld [vmem:[%s1 + $0x238] sm:$0xff]
  %v98 = vld [vmem:[%s1 + $0x240] sm:$0xff]
  %v99 = vld [vmem:[%s1 + $0x248] sm:$0xff]
  %v100 = vld [vmem:[%s1 + $0x250] sm:$0xff]
  %v101 = vld [vmem:[%s1 + $0x258] sm:$0xff]
  %v102 = vld [vmem:[%s1 + $0x260] sm:$0xff]
  %v103 = vld [vmem:[%s1 + $0x268] sm:$0xff]
  %v104 = vld [vmem:[%s1 + $0x270] sm:$0xff]
  %v105 = vld [vmem:[%s1 + $0x278] sm:$0xff]
  %v106 = vld [vmem:[%s1 + $0x280] sm:$0xff]
  %v107 = vld [vmem:[%s1 + $0x288] sm:$0xff]
  %v108 = vld [vmem:[%s1 + $0x290] sm:$0xff]
  %v109 = vld [vmem:[%s1 + $0x298] sm:$0xff]
  %v110 = vld [vmem:[%s1 + $0x2a0] sm:$0xff]
  %v111 = vld [vmem:[%s1 + $0x2a8] sm:$0xff]
  %v112 = vld [vmem:[%s1 + $0x2b0] sm:$0xff]
  %v113 = vld [vmem:[%s1 + $0x2b8] sm:$0xff]
  %v114 = vld [vmem:[%s1 + $0x2c0] sm:$0xff]
  %v115 = vld [vmem:[%s1 + $0x2c8] sm:$0xff]
  %v116 = vld [vmem:[%s1 + $0x2d0] sm:$0xff]
  %v117 = vld [vmem:[%s1 + $0x2d8] sm:$0xff]
  %v118 = vld [vmem:[%s1 + $0x2e0] sm:$0xff]
  %v119 = vld [vmem:[%s1 + $0x2e8] sm:$0xff]
  %v120 = vld [vmem:[%s1 + $0x2f0] sm:$0xff]
  %v121 = vld [vmem:[%s1 + $0x2f8] sm:$0xff]
  %v122 = vld [vmem:[%s1 + $0x300] sm:$0xff]
  %v123 = vld [vmem:[%s1 + $0x308] sm:$0xff]
  %v124 = vld [vmem:[%s1 + $0x310] sm:$0xff]
  %v125 = vld [vmem:[%s1 + $0x318] sm:$0xff]
  %v126 = vld [vmem:[%s1 + $0x320] sm:$0xff]
  %v127 = vld [vmem:[%s1 + $0x328] sm:$0xff]
  %v128 = vld [vmem:[%s1 + $0x330] sm:$0xff]
  %v129 = vld [vmem:[%s1 + $0x338] sm:$0xff]
  %v130 = vld [vmem:[%s1 + $0x340] sm:$0xff]
  %v131 = vld [vmem:[%s1 + $0x348] sm:$0xff]
  %v132 = vld [vmem:[%s1 + $0x350] sm:$0xff]
  %v133 = vld [vmem:[%s1 + $0x358] sm:$0xff]
  %v134 = vld [vmem:[%s1 + $0x360] sm:$0xff]
  %v135 = vld [vmem:[%s1 + $0x368] sm:$0xff]
  %v136 = vld [vmem:[%s1 + $0x370] sm:$0xff]
  %v137 = vld [vmem:[%s1 + $0x378] sm:$0xff]
  %v138 = vld [vmem:[%s1 + $0x380] sm:$0xff]
  %v139 = vld [vmem:[%s1 + $0x388] sm:$0xff]
  %v140 = vld [vmem:[%s1 + $0x390] sm:$0xff]
  %v141 = vld [vmem:[%s1 + $0x398] sm:$0xff]
  %v142 = vld [vmem:[%s1 + $0x3a0] sm:$0xff]
  %v143 = vld [vmem:[%s1 + $0x3a8] sm:$0xff]
  %v144 = vld [vmem:[%s1 + $0x3b0] sm:$0xff]
  %v145 = vld [vmem:[%s1 + $0x3b8] sm:$0xff]
  %v146 = vld [vmem:[%s1 + $0x3c0] sm:$0xff]
  %v147 = vld [vmem:[%s1 + $0x3c8] sm:$0xff]
  %v148 = vld [vmem:[%s1 + $0x3d0] sm:$0xff]
  %v149 = vld [vmem:[%s1 + $0x3d8] sm:$0xff]
  %v150 = vld [vmem:[%s1 + $0x3e0] sm:$0xff]
  %v151 = vld [vmem:[%s1 + $0x3e8] sm:$0xff]
  %v152 = vld [vmem:[%s1 + $0x3f0] sm:$0xff]
  %v153 = vld [vmem:[%s1 + $0x3f8] sm:$0xff]
  %v154 = vld [vmem:[%s2] sm:$0xff]
  %v155 = vld [vmem:[%s3] sm:$0xff]
  %v156 = vld [vmem:[%s3 + $0x8] sm:$0xff]
  %v157 = vld [vmem:[%s3 + $0x10] sm:$0xff]
  %v158 = vld [vmem:[%s3 + $0x18] sm:$0xff]
  %vm159 = vcmask 261120
  %v161 = vsel %vm159, %v25, 0
  %163 = vmatprep.subr.mxu0 0.0
  %164 = vmatpush1.msra.mxu0 0.0
  %165 = vmatprep.subr.mxu0 0.0
  %166 = vmatpush1.msra.mxu0 0.0
  %167 = vmatprep.subr.mxu0 0.0
  %168 = vmatpush1.msra.mxu0 0.0
  %169 = vmatprep.subr.mxu0 0.0
  %170 = vmatpush1.msra.mxu0 0.0
  %171 = vmatprep.subr.mxu0 0.0
  %172 = vmatpush1.msra.mxu0 0.0
  %173 = vmatprep.subr.mxu0 0.0
  %174 = vmatpush1.msra.mxu0 0.0
  %175 = vmatprep.subr.mxu0 0.0
  %176 = vmatpush1.msra.mxu0 0.0
  %177 = vmatprep.subr.mxu0 0.0
  %178 = vmatpush1.msra.mxu0 0.0
  %179 = vmatprep.subr.mxu0 0.0
  %180 = vmatpush1.msra.mxu0 0.0
  %181 = vmatprep.subr.mxu0 0.0
  %182 = vmatpush1.msra.mxu0 0.0
  %183 = vmatprep.subr.mxu0 0.0
  %184 = vmatpush1.msra.mxu0 0.0
  %185 = vmatprep.subr.mxu0 0.0
  %186 = vmatpush1.msra.mxu0 0.0
  %187 = vmatprep.subr.mxu0 0.0
  %188 = vmatpush1.msra.mxu0 %v158
  %189 = vmatprep.subr.mxu0 0.0
  %190 = vmatpush1.msra.mxu0 %v157
  %191 = vmatprep.subr.mxu0 0.0
  %192 = vmatpush1.msra.mxu0 %v156
  %193 = vmatprep.subr.mxu0 0.0
  %194 = vmatpush1.msra.mxu0 %v155
  %195 = vmatprep.subr.mxu0 0.0
  %196 = vmatpush2.msra.mxu0 0.0
  %197 = vmatprep.subr.mxu0 0.0
  %198 = vmatpush2.msra.mxu0 0.0
  %199 = vmatprep.subr.mxu0 0.0
  %200 = vmatpush2.msra.mxu0 0.0
  %201 = vmatprep.subr.mxu0 0.0
  %202 = vmatpush2.msra.mxu0 0.0
  %203 = vmatprep.subr.mxu0 0.0
  %204 = vmatpush2.msra.mxu0 0.0
  %205 = vmatprep.subr.mxu0 0.0
  %206 = vmatpush2.msra.mxu0 0.0
  %207 = vmatprep.subr.mxu0 0.0
  %208 = vmatpush2.msra.mxu0 0.0
  %209 = vmatprep.subr.mxu0 0.0
  %210 = vmatpush2.msra.mxu0 0.0
  %211 = vmatprep.subr.mxu0 0.0
  %212 = vmatpush2.msra.mxu0 0.0
  %213 = vmatprep.subr.mxu0 0.0
  %214 = vmatpush2.msra.mxu0 0.0
  %215 = vmatprep.subr.mxu0 0.0
  %216 = vmatpush2.msra.mxu0 0.0
  %217 = vmatprep.subr.mxu0 0.0
  %218 = vmatpush2.msra.mxu0 0.0
  %219 = vmatprep.subr.mxu0 0.0
  %220 = vmatpush2.msra.mxu0 0.0
  %221 = vmatprep.subr.mxu0 0.0
  %222 = vmatpush2.msra.mxu0 0.0
  %223 = vmatprep.subr.mxu0 0.0
  %224 = vmatpush2.msra.mxu0 0.0
  %225 = vmatprep.subr.mxu0 0.0
  %226 = vmatpush2.msra.mxu0 0.0
  %227 = vmatprep.mubr.f32.mxu0 0.0
  %228 = vmatmul.mubr.f32.gmra.mxu0 %v161
  %v229 = vpop.f32.mrf.mxu0
  %v230 = vadd.f32 0.0, %v229
  %v231 = vpop.f32.mrf.mxu0
  %232 = vdwg.mxu0
  %v234 = vcombine.high %v230, %v230
  %v236 = vunpack.c.l.s4 1966171168
  %v237 = vunpack.c.0.s8 %v236
  %v238 = vlaneseq
  %v239 = vshrl.u32 %v238, 7
  %v240 = vsub.s32 %v237, %v239
  %v241 = vrot.slane %v230, %v240
  %v243 = vunpack.c.l.s4 1966171168
  %v244 = vunpack.c.0.s8 %v243
  %v245 = vlaneseq
  %v246 = vshrl.u32 %v245, 7
  %v247 = vsub.s32 %v244, %v246
  %v248 = vrot.slane %v234, %v247
  %v249 = vcombine.high %v241, %v241
  %v250 = vcombine.high %v248, %v248
  %v252 = vunpack.c.l.s4 1966171168
  %v253 = vunpack.c.0.s8 %v252
  %v254 = vlaneseq
  %v255 = vshrl.u32 %v254, 7
  %v256 = vsub.s32 %v253, %v255
  %v257 = vrot.slane %v241, %v256
  %v259 = vunpack.c.l.s4 1966171168
  %v260 = vunpack.c.0.s8 %v259
  %v261 = vlaneseq
  %v262 = vshrl.u32 %v261, 7
  %v263 = vsub.s32 %v260, %v262
  %v264 = vrot.slane %v248, %v263
  %v266 = vunpack.c.l.s4 1966171168
  %v267 = vunpack.c.0.s8 %v266
  %v268 = vlaneseq
  %v269 = vshrl.u32 %v268, 7
  %v270 = vsub.s32 %v267, %v269
  %v271 = vrot.slane %v249, %v270
  %v273 = vunpack.c.l.s4 1966171168
  %v274 = vunpack.c.0.s8 %v273
  %v275 = vlaneseq
  %v276 = vshrl.u32 %v275, 7
  %v277 = vsub.s32 %v274, %v276
  %v278 = vrot.slane %v250, %v277
  %v279 = vcombine.high %v257, %v257
  %v280 = vcombine.high %v264, %v264
  %v281 = vcombine.high %v271, %v271
  %v282 = vcombine.high %v278, %v278
  %v283 = vlaneseq
  %v284 = vshrl.u32 %v283, 7
  %v285 = vsub.s32 0, %v284
  %v286 = vrot.slane %v257, %v285
  %v288 = vmul.f32 %v26, %v286
  %v289 = vmul.f32 %v27, %v286
  %v290 = vmul.f32 %v28, %v286
  %v291 = vmul.f32 %v29, %v286
  %v292 = vmul.f32 %v30, %v286
  %v293 = vmul.f32 %v31, %v286
  %v294 = vmul.f32 %v32, %v286
  %v295 = vmul.f32 %v33, %v286
  %v296 = vmul.f32 %v34, %v286
  %v297 = vmul.f32 %v35, %v286
  %v298 = vmul.f32 %v36, %v286
  %v299 = vmul.f32 %v37, %v286
  %v300 = vmul.f32 %v38, %v286
  %v301 = vmul.f32 %v39, %v286
  %v302 = vmul.f32 %v40, %v286
  %v303 = vmul.f32 %v41, %v286
  %vm304 = vcmask 392192
  %v305 = vsel %vm304, %v288, 0.0
  %306 = vadd.xlane.f32.xlu0 %v305
  %v307 = vpop.xlane.xlu0 %306
  %v308 = vsel %vm304, %v289, 0.0
  %309 = vadd.xlane.f32.xlu0 %v308
  %v310 = vpop.xlane.xlu0 %309
  %v311 = vsel %vm304, %v290, 0.0
  %312 = vadd.xlane.f32.xlu0 %v311
  %v313 = vpop.xlane.xlu0 %312
  %v314 = vsel %vm304, %v291, 0.0
  %315 = vadd.xlane.f32.xlu0 %v314
  %v316 = vpop.xlane.xlu0 %315
  %v317 = vsel %vm304, %v292, 0.0
  %318 = vadd.xlane.f32.xlu0 %v317
  %v319 = vpop.xlane.xlu0 %318
  %v320 = vsel %vm304, %v293, 0.0
  %321 = vadd.xlane.f32.xlu0 %v320
  %v322 = vpop.xlane.xlu0 %321
  %v323 = vsel %vm304, %v294, 0.0
  %324 = vadd.xlane.f32.xlu0 %v323
  %v325 = vpop.xlane.xlu0 %324
  %v326 = vsel %vm304, %v295, 0.0
  %327 = vadd.xlane.f32.xlu0 %v326
  %v328 = vpop.xlane.xlu0 %327
  %v329 = vsel %vm304, %v296, 0.0
  %330 = vadd.xlane.f32.xlu0 %v329
  %v331 = vpop.xlane.xlu0 %330
  %v332 = vsel %vm304, %v297, 0.0
  %333 = vadd.xlane.f32.xlu0 %v332
  %v334 = vpop.xlane.xlu0 %333
  %v335 = vsel %vm304, %v298, 0.0
  %336 = vadd.xlane.f32.xlu0 %v335
  %v337 = vpop.xlane.xlu0 %336
  %v338 = vsel %vm304, %v299, 0.0
  %339 = vadd.xlane.f32.xlu0 %v338
  %v340 = vpop.xlane.xlu0 %339
  %v341 = vsel %vm304, %v300, 0.0
  %342 = vadd.xlane.f32.xlu0 %v341
  %v343 = vpop.xlane.xlu0 %342
  %v344 = vsel %vm304, %v301, 0.0
  %345 = vadd.xlane.f32.xlu0 %v344
  %v346 = vpop.xlane.xlu0 %345
  %v347 = vsel %vm304, %v302, 0.0
  %348 = vadd.xlane.f32.xlu0 %v347
  %v349 = vpop.xlane.xlu0 %348
  %v350 = vsel %vm304, %v303, 0.0
  %351 = vadd.xlane.f32.xlu0 %v350
  %v352 = vpop.xlane.xlu0 %351
  %v353 = vlaneseq
  %v354 = vshrl.u32 %v353, 7
  %v355 = vsub.s32 0, %v354
  %v356 = vrot.slane %v271, %v355
  %v358 = vmul.f32 %v42, %v356
  %v359 = vmul.f32 %v43, %v356
  %v360 = vmul.f32 %v44, %v356
  %v361 = vmul.f32 %v45, %v356
  %v362 = vmul.f32 %v46, %v356
  %v363 = vmul.f32 %v47, %v356
  %v364 = vmul.f32 %v48, %v356
  %v365 = vmul.f32 %v49, %v356
  %v366 = vmul.f32 %v50, %v356
  %v367 = vmul.f32 %v51, %v356
  %v368 = vmul.f32 %v52, %v356
  %v369 = vmul.f32 %v53, %v356
  %v370 = vmul.f32 %v54, %v356
  %v371 = vmul.f32 %v55, %v356
  %v372 = vmul.f32 %v56, %v356
  %v373 = vmul.f32 %v57, %v356
  %v374 = vsel %vm304, %v358, 0.0
  %375 = vadd.xlane.f32.xlu0 %v374
  %v376 = vpop.xlane.xlu0 %375
  %v377 = vsel %vm304, %v359, 0.0
  %378 = vadd.xlane.f32.xlu0 %v377
  %v379 = vpop.xlane.xlu0 %378
  %v380 = vsel %vm304, %v360, 0.0
  %381 = vadd.xlane.f32.xlu0 %v380
  %v382 = vpop.xlane.xlu0 %381
  %v383 = vsel %vm304, %v361, 0.0
  %384 = vadd.xlane.f32.xlu0 %v383
  %v385 = vpop.xlane.xlu0 %384
  %v386 = vsel %vm304, %v362, 0.0
  %387 = vadd.xlane.f32.xlu0 %v386
  %v388 = vpop.xlane.xlu0 %387
  %v389 = vsel %vm304, %v363, 0.0
  %390 = vadd.xlane.f32.xlu0 %v389
  %v391 = vpop.xlane.xlu0 %390
  %v392 = vsel %vm304, %v364, 0.0
  %393 = vadd.xlane.f32.xlu0 %v392
  %v394 = vpop.xlane.xlu0 %393
  %v395 = vsel %vm304, %v365, 0.0
  %396 = vadd.xlane.f32.xlu0 %v395
  %v397 = vpop.xlane.xlu0 %396
  %v398 = vsel %vm304, %v366, 0.0
  %399 = vadd.xlane.f32.xlu0 %v398
  %v400 = vpop.xlane.xlu0 %399
  %v401 = vsel %vm304, %v367, 0.0
  %402 = vadd.xlane.f32.xlu0 %v401
  %v403 = vpop.xlane.xlu0 %402
  %v404 = vsel %vm304, %v368, 0.0
  %405 = vadd.xlane.f32.xlu0 %v404
  %v406 = vpop.xlane.xlu0 %405
  %v407 = vsel %vm304, %v369, 0.0
  %408 = vadd.xlane.f32.xlu0 %v407
  %v409 = vpop.xlane.xlu0 %408
  %v410 = vsel %vm304, %v370, 0.0
  %411 = vadd.xlane.f32.xlu0 %v410
  %v412 = vpop.xlane.xlu0 %411
  %v413 = vsel %vm304, %v371, 0.0
  %414 = vadd.xlane.f32.xlu0 %v413
  %v415 = vpop.xlane.xlu0 %414
  %v416 = vsel %vm304, %v372, 0.0
  %417 = vadd.xlane.f32.xlu0 %v416
  %v418 = vpop.xlane.xlu0 %417
  %v419 = vsel %vm304, %v373, 0.0
  %420 = vadd.xlane.f32.xlu0 %v419
  %v421 = vpop.xlane.xlu0 %420
  %v422 = vlaneseq
  %v423 = vshrl.u32 %v422, 7
  %v424 = vsub.s32 0, %v423
  %v425 = vrot.slane %v279, %v424
  %v427 = vmul.f32 %v58, %v425
  %v428 = vmul.f32 %v59, %v425
  %v429 = vmul.f32 %v60, %v425
  %v430 = vmul.f32 %v61, %v425
  %v431 = vmul.f32 %v62, %v425
  %v432 = vmul.f32 %v63, %v425
  %v433 = vmul.f32 %v64, %v425
  %v434 = vmul.f32 %v65, %v425
  %v435 = vmul.f32 %v66, %v425
  %v436 = vmul.f32 %v67, %v425
  %v437 = vmul.f32 %v68, %v425
  %v438 = vmul.f32 %v69, %v425
  %v439 = vmul.f32 %v70, %v425
  %v440 = vmul.f32 %v71, %v425
  %v441 = vmul.f32 %v72, %v425
  %v442 = vmul.f32 %v73, %v425
  %v443 = vsel %vm304, %v427, 0.0
  %444 = vadd.xlane.f32.xlu0 %v443
  %v445 = vpop.xlane.xlu0 %444
  %v446 = vsel %vm304, %v428, 0.0
  %447 = vadd.xlane.f32.xlu0 %v446
  %v448 = vpop.xlane.xlu0 %447
  %v449 = vsel %vm304, %v429, 0.0
  %450 = vadd.xlane.f32.xlu0 %v449
  %v451 = vpop.xlane.xlu0 %450
  %v452 = vsel %vm304, %v430, 0.0
  %453 = vadd.xlane.f32.xlu0 %v452
  %v454 = vpop.xlane.xlu0 %453
  %v455 = vsel %vm304, %v431, 0.0
  %456 = vadd.xlane.f32.xlu0 %v455
  %v457 = vpop.xlane.xlu0 %456
  %v458 = vsel %vm304, %v432, 0.0
  %459 = vadd.xlane.f32.xlu0 %v458
  %v460 = vpop.xlane.xlu0 %459
  %v461 = vsel %vm304, %v433, 0.0
  %462 = vadd.xlane.f32.xlu0 %v461
  %v463 = vpop.xlane.xlu0 %462
  %v464 = vsel %vm304, %v434, 0.0
  %465 = vadd.xlane.f32.xlu0 %v464
  %v466 = vpop.xlane.xlu0 %465
  %v467 = vsel %vm304, %v435, 0.0
  %468 = vadd.xlane.f32.xlu0 %v467
  %v469 = vpop.xlane.xlu0 %468
  %v470 = vsel %vm304, %v436, 0.0
  %471 = vadd.xlane.f32.xlu0 %v470
  %v472 = vpop.xlane.xlu0 %471
  %v473 = vsel %vm304, %v437, 0.0
  %474 = vadd.xlane.f32.xlu0 %v473
  %v475 = vpop.xlane.xlu0 %474
  %v476 = vsel %vm304, %v438, 0.0
  %477 = vadd.xlane.f32.xlu0 %v476
  %v478 = vpop.xlane.xlu0 %477
  %v479 = vsel %vm304, %v439, 0.0
  %480 = vadd.xlane.f32.xlu0 %v479
  %v481 = vpop.xlane.xlu0 %480
  %v482 = vsel %vm304, %v440, 0.0
  %483 = vadd.xlane.f32.xlu0 %v482
  %v484 = vpop.xlane.xlu0 %483
  %v485 = vsel %vm304, %v441, 0.0
  %486 = vadd.xlane.f32.xlu0 %v485
  %v487 = vpop.xlane.xlu0 %486
  %v488 = vsel %vm304, %v442, 0.0
  %489 = vadd.xlane.f32.xlu0 %v488
  %v490 = vpop.xlane.xlu0 %489
  %v491 = vlaneseq
  %v492 = vshrl.u32 %v491, 7
  %v493 = vsub.s32 0, %v492
  %v494 = vrot.slane %v281, %v493
  %v496 = vmul.f32 %v74, %v494
  %v497 = vmul.f32 %v75, %v494
  %v498 = vmul.f32 %v76, %v494
  %v499 = vmul.f32 %v77, %v494
  %v500 = vmul.f32 %v78, %v494
  %v501 = vmul.f32 %v79, %v494
  %v502 = vmul.f32 %v80, %v494
  %v503 = vmul.f32 %v81, %v494
  %v504 = vmul.f32 %v82, %v494
  %v505 = vmul.f32 %v83, %v494
  %v506 = vmul.f32 %v84, %v494
  %v507 = vmul.f32 %v85, %v494
  %v508 = vmul.f32 %v86, %v494
  %v509 = vmul.f32 %v87, %v494
  %v510 = vmul.f32 %v88, %v494
  %v511 = vmul.f32 %v89, %v494
  %v512 = vsel %vm304, %v496, 0.0
  %513 = vadd.xlane.f32.xlu0 %v512
  %v514 = vpop.xlane.xlu0 %513
  %v515 = vsel %vm304, %v497, 0.0
  %516 = vadd.xlane.f32.xlu0 %v515
  %v517 = vpop.xlane.xlu0 %516
  %v518 = vsel %vm304, %v498, 0.0
  %519 = vadd.xlane.f32.xlu0 %v518
  %v520 = vpop.xlane.xlu0 %519
  %v521 = vsel %vm304, %v499, 0.0
  %522 = vadd.xlane.f32.xlu0 %v521
  %v523 = vpop.xlane.xlu0 %522
  %v524 = vsel %vm304, %v500, 0.0
  %525 = vadd.xlane.f32.xlu0 %v524
  %v526 = vpop.xlane.xlu0 %525
  %v527 = vsel %vm304, %v501, 0.0
  %528 = vadd.xlane.f32.xlu0 %v527
  %v529 = vpop.xlane.xlu0 %528
  %v530 = vsel %vm304, %v502, 0.0
  %531 = vadd.xlane.f32.xlu0 %v530
  %v532 = vpop.xlane.xlu0 %531
  %v533 = vsel %vm304, %v503, 0.0
  %534 = vadd.xlane.f32.xlu0 %v533
  %v535 = vpop.xlane.xlu0 %534
  %v536 = vsel %vm304, %v504, 0.0
  %537 = vadd.xlane.f32.xlu0 %v536
  %v538 = vpop.xlane.xlu0 %537
  %v539 = vsel %vm304, %v505, 0.0
  %540 = vadd.xlane.f32.xlu0 %v539
  %v541 = vpop.xlane.xlu0 %540
  %v542 = vsel %vm304, %v506, 0.0
  %543 = vadd.xlane.f32.xlu0 %v542
  %v544 = vpop.xlane.xlu0 %543
  %v545 = vsel %vm304, %v507, 0.0
  %546 = vadd.xlane.f32.xlu0 %v545
  %v547 = vpop.xlane.xlu0 %546
  %v548 = vsel %vm304, %v508, 0.0
  %549 = vadd.xlane.f32.xlu0 %v548
  %v550 = vpop.xlane.xlu0 %549
  %v551 = vsel %vm304, %v509, 0.0
  %552 = vadd.xlane.f32.xlu0 %v551
  %v553 = vpop.xlane.xlu0 %552
  %v554 = vsel %vm304, %v510, 0.0
  %555 = vadd.xlane.f32.xlu0 %v554
  %v556 = vpop.xlane.xlu0 %555
  %v557 = vsel %vm304, %v511, 0.0
  %558 = vadd.xlane.f32.xlu0 %v557
  %v559 = vpop.xlane.xlu0 %558
  %v560 = vlaneseq
  %v561 = vshrl.u32 %v560, 7
  %v562 = vsub.s32 0, %v561
  %v563 = vrot.slane %v264, %v562
  %v565 = vmul.f32 %v90, %v563
  %v566 = vmul.f32 %v91, %v563
  %v567 = vmul.f32 %v92, %v563
  %v568 = vmul.f32 %v93, %v563
  %v569 = vmul.f32 %v94, %v563
  %v570 = vmul.f32 %v95, %v563
  %v571 = vmul.f32 %v96, %v563
  %v572 = vmul.f32 %v97, %v563
  %v573 = vmul.f32 %v98, %v563
  %v574 = vmul.f32 %v99, %v563
  %v575 = vmul.f32 %v100, %v563
  %v576 = vmul.f32 %v101, %v563
  %v577 = vmul.f32 %v102, %v563
  %v578 = vmul.f32 %v103, %v563
  %v579 = vmul.f32 %v104, %v563
  %v580 = vmul.f32 %v105, %v563
  %v581 = vsel %vm304, %v565, 0.0
  %582 = vadd.xlane.f32.xlu0 %v581
  %v583 = vpop.xlane.xlu0 %582
  %v584 = vsel %vm304, %v566, 0.0
  %585 = vadd.xlane.f32.xlu0 %v584
  %v586 = vpop.xlane.xlu0 %585
  %v587 = vsel %vm304, %v567, 0.0
  %588 = vadd.xlane.f32.xlu0 %v587
  %v589 = vpop.xlane.xlu0 %588
  %v590 = vsel %vm304, %v568, 0.0
  %591 = vadd.xlane.f32.xlu0 %v590
  %v592 = vpop.xlane.xlu0 %591
  %v593 = vsel %vm304, %v569, 0.0
  %594 = vadd.xlane.f32.xlu0 %v593
  %v595 = vpop.xlane.xlu0 %594
  %v596 = vsel %vm304, %v570, 0.0
  %597 = vadd.xlane.f32.xlu0 %v596
  %v598 = vpop.xlane.xlu0 %597
  %v599 = vsel %vm304, %v571, 0.0
  %600 = vadd.xlane.f32.xlu0 %v599
  %v601 = vpop.xlane.xlu0 %600
  %v602 = vsel %vm304, %v572, 0.0
  %603 = vadd.xlane.f32.xlu0 %v602
  %v604 = vpop.xlane.xlu0 %603
  %v605 = vsel %vm304, %v573, 0.0
  %606 = vadd.xlane.f32.xlu0 %v605
  %v607 = vpop.xlane.xlu0 %606
  %v608 = vsel %vm304, %v574, 0.0
  %609 = vadd.xlane.f32.xlu0 %v608
  %v610 = vpop.xlane.xlu0 %609
  %v611 = vsel %vm304, %v575, 0.0
  %612 = vadd.xlane.f32.xlu0 %v611
  %v613 = vpop.xlane.xlu0 %612
  %v614 = vsel %vm304, %v576, 0.0
  %615 = vadd.xlane.f32.xlu0 %v614
  %v616 = vpop.xlane.xlu0 %615
  %v617 = vsel %vm304, %v577, 0.0
  %618 = vadd.xlane.f32.xlu0 %v617
  %v619 = vpop.xlane.xlu0 %618
  %v620 = vsel %vm304, %v578, 0.0
  %621 = vadd.xlane.f32.xlu0 %v620
  %v622 = vpop.xlane.xlu0 %621
  %v623 = vsel %vm304, %v579, 0.0
  %624 = vadd.xlane.f32.xlu0 %v623
  %v625 = vpop.xlane.xlu0 %624
  %v626 = vsel %vm304, %v580, 0.0
  %627 = vadd.xlane.f32.xlu0 %v626
  %v628 = vpop.xlane.xlu0 %627
  %v629 = vlaneseq
  %v630 = vshrl.u32 %v629, 7
  %v631 = vsub.s32 0, %v630
  %v632 = vrot.slane %v278, %v631
  %v634 = vmul.f32 %v106, %v632
  %v635 = vmul.f32 %v107, %v632
  %v636 = vmul.f32 %v108, %v632
  %v637 = vmul.f32 %v109, %v632
  %v638 = vmul.f32 %v110, %v632
  %v639 = vmul.f32 %v111, %v632
  %v640 = vmul.f32 %v112, %v632
  %v641 = vmul.f32 %v113, %v632
  %v642 = vmul.f32 %v114, %v632
  %v643 = vmul.f32 %v115, %v632
  %v644 = vmul.f32 %v116, %v632
  %v645 = vmul.f32 %v117, %v632
  %v646 = vmul.f32 %v118, %v632
  %v647 = vmul.f32 %v119, %v632
  %v648 = vmul.f32 %v120, %v632
  %v649 = vmul.f32 %v121, %v632
  %v650 = vsel %vm304, %v634, 0.0
  %651 = vadd.xlane.f32.xlu0 %v650
  %v652 = vpop.xlane.xlu0 %651
  %v653 = vsel %vm304, %v635, 0.0
  %654 = vadd.xlane.f32.xlu0 %v653
  %v655 = vpop.xlane.xlu0 %654
  %v656 = vsel %vm304, %v636, 0.0
  %657 = vadd.xlane.f32.xlu0 %v656
  %v658 = vpop.xlane.xlu0 %657
  %v659 = vsel %vm304, %v637, 0.0
  %660 = vadd.xlane.f32.xlu0 %v659
  %v661 = vpop.xlane.xlu0 %660
  %v662 = vsel %vm304, %v638, 0.0
  %663 = vadd.xlane.f32.xlu0 %v662
  %v664 = vpop.xlane.xlu0 %663
  %v665 = vsel %vm304, %v639, 0.0
  %666 = vadd.xlane.f32.xlu0 %v665
  %v667 = vpop.xlane.xlu0 %666
  %v668 = vsel %vm304, %v640, 0.0
  %669 = vadd.xlane.f32.xlu0 %v668
  %v670 = vpop.xlane.xlu0 %669
  %v671 = vsel %vm304, %v641, 0.0
  %672 = vadd.xlane.f32.xlu0 %v671
  %v673 = vpop.xlane.xlu0 %672
  %v674 = vsel %vm304, %v642, 0.0
  %675 = vadd.xlane.f32.xlu0 %v674
  %v676 = vpop.xlane.xlu0 %675
  %v677 = vsel %vm304, %v643, 0.0
  %678 = vadd.xlane.f32.xlu0 %v677
  %v679 = vpop.xlane.xlu0 %678
  %v680 = vsel %vm304, %v644, 0.0
  %681 = vadd.xlane.f32.xlu0 %v680
  %v682 = vpop.xlane.xlu0 %681
  %v683 = vsel %vm304, %v645, 0.0
  %684 = vadd.xlane.f32.xlu0 %v683
  %v685 = vpop.xlane.xlu0 %684
  %v686 = vsel %vm304, %v646, 0.0
  %687 = vadd.xlane.f32.xlu0 %v686
  %v688 = vpop.xlane.xlu0 %687
  %v689 = vsel %vm304, %v647, 0.0
  %690 = vadd.xlane.f32.xlu0 %v689
  %v691 = vpop.xlane.xlu0 %690
  %v692 = vsel %vm304, %v648, 0.0
  %693 = vadd.xlane.f32.xlu0 %v692
  %v694 = vpop.xlane.xlu0 %693
  %v695 = vsel %vm304, %v649, 0.0
  %696 = vadd.xlane.f32.xlu0 %v695
  %v697 = vpop.xlane.xlu0 %696
  %v698 = vlaneseq
  %v699 = vshrl.u32 %v698, 7
  %v700 = vsub.s32 0, %v699
  %v701 = vrot.slane %v280, %v700
  %v703 = vmul.f32 %v122, %v701
  %v704 = vmul.f32 %v123, %v701
  %v705 = vmul.f32 %v124, %v701
  %v706 = vmul.f32 %v125, %v701
  %v707 = vmul.f32 %v126, %v701
  %v708 = vmul.f32 %v127, %v701
  %v709 = vmul.f32 %v128, %v701
  %v710 = vmul.f32 %v129, %v701
  %v711 = vmul.f32 %v130, %v701
  %v712 = vmul.f32 %v131, %v701
  %v713 = vmul.f32 %v132, %v701
  %v714 = vmul.f32 %v133, %v701
  %v715 = vmul.f32 %v134, %v701
  %v716 = vmul.f32 %v135, %v701
  %v717 = vmul.f32 %v136, %v701
  %v718 = vmul.f32 %v137, %v701
  %v719 = vsel %vm304, %v703, 0.0
  %720 = vadd.xlane.f32.xlu0 %v719
  %v721 = vpop.xlane.xlu0 %720
  %v722 = vsel %vm304, %v704, 0.0
  %723 = vadd.xlane.f32.xlu0 %v722
  %v724 = vpop.xlane.xlu0 %723
  %v725 = vsel %vm304, %v705, 0.0
  %726 = vadd.xlane.f32.xlu0 %v725
  %v727 = vpop.xlane.xlu0 %726
  %v728 = vsel %vm304, %v706, 0.0
  %729 = vadd.xlane.f32.xlu0 %v728
  %v730 = vpop.xlane.xlu0 %729
  %v731 = vsel %vm304, %v707, 0.0
  %732 = vadd.xlane.f32.xlu0 %v731
  %v733 = vpop.xlane.xlu0 %732
  %v734 = vsel %vm304, %v708, 0.0
  %735 = vadd.xlane.f32.xlu0 %v734
  %v736 = vpop.xlane.xlu0 %735
  %v737 = vsel %vm304, %v709, 0.0
  %738 = vadd.xlane.f32.xlu0 %v737
  %v739 = vpop.xlane.xlu0 %738
  %v740 = vsel %vm304, %v710, 0.0
  %741 = vadd.xlane.f32.xlu0 %v740
  %v742 = vpop.xlane.xlu0 %741
  %v743 = vsel %vm304, %v711, 0.0
  %744 = vadd.xlane.f32.xlu0 %v743
  %v745 = vpop.xlane.xlu0 %744
  %v746 = vsel %vm304, %v712, 0.0
  %747 = vadd.xlane.f32.xlu0 %v746
  %v748 = vpop.xlane.xlu0 %747
  %v749 = vsel %vm304, %v713, 0.0
  %750 = vadd.xlane.f32.xlu0 %v749
  %v751 = vpop.xlane.xlu0 %750
  %v752 = vsel %vm304, %v714, 0.0
  %753 = vadd.xlane.f32.xlu0 %v752
  %v754 = vpop.xlane.xlu0 %753
  %v755 = vsel %vm304, %v715, 0.0
  %756 = vadd.xlane.f32.xlu0 %v755
  %v757 = vpop.xlane.xlu0 %756
  %v758 = vsel %vm304, %v716, 0.0
  %759 = vadd.xlane.f32.xlu0 %v758
  %v760 = vpop.xlane.xlu0 %759
  %v761 = vsel %vm304, %v717, 0.0
  %762 = vadd.xlane.f32.xlu0 %v761
  %v763 = vpop.xlane.xlu0 %762
  %v764 = vsel %vm304, %v718, 0.0
  %765 = vadd.xlane.f32.xlu0 %v764
  %v766 = vpop.xlane.xlu0 %765
  %v767 = vlaneseq
  %v768 = vshrl.u32 %v767, 7
  %v769 = vsub.s32 0, %v768
  %v770 = vrot.slane %v282, %v769
  %v772 = vmul.f32 %v138, %v770
  %v773 = vmul.f32 %v139, %v770
  %v774 = vmul.f32 %v140, %v770
  %v775 = vmul.f32 %v141, %v770
  %v776 = vmul.f32 %v142, %v770
  %v777 = vmul.f32 %v143, %v770
  %v778 = vmul.f32 %v144, %v770
  %v779 = vmul.f32 %v145, %v770
  %v780 = vmul.f32 %v146, %v770
  %v781 = vmul.f32 %v147, %v770
  %v782 = vmul.f32 %v148, %v770
  %v783 = vmul.f32 %v149, %v770
  %v784 = vmul.f32 %v150, %v770
  %v785 = vmul.f32 %v151, %v770
  %v786 = vmul.f32 %v152, %v770
  %v787 = vmul.f32 %v153, %v770
  %v788 = vsel %vm304, %v772, 0.0
  %789 = vadd.xlane.f32.xlu0 %v788
  %v790 = vpop.xlane.xlu0 %789
  %v791 = vsel %vm304, %v773, 0.0
  %792 = vadd.xlane.f32.xlu0 %v791
  %v793 = vpop.xlane.xlu0 %792
  %v794 = vsel %vm304, %v774, 0.0
  %795 = vadd.xlane.f32.xlu0 %v794
  %v796 = vpop.xlane.xlu0 %795
  %v797 = vsel %vm304, %v775, 0.0
  %798 = vadd.xlane.f32.xlu0 %v797
  %v799 = vpop.xlane.xlu0 %798
  %v800 = vsel %vm304, %v776, 0.0
  %801 = vadd.xlane.f32.xlu0 %v800
  %v802 = vpop.xlane.xlu0 %801
  %v803 = vsel %vm304, %v777, 0.0
  %804 = vadd.xlane.f32.xlu0 %v803
  %v805 = vpop.xlane.xlu0 %804
  %v806 = vsel %vm304, %v778, 0.0
  %807 = vadd.xlane.f32.xlu0 %v806
  %v808 = vpop.xlane.xlu0 %807
  %v809 = vsel %vm304, %v779, 0.0
  %810 = vadd.xlane.f32.xlu0 %v809
  %v811 = vpop.xlane.xlu0 %810
  %v812 = vsel %vm304, %v780, 0.0
  %813 = vadd.xlane.f32.xlu0 %v812
  %v814 = vpop.xlane.xlu0 %813
  %v815 = vsel %vm304, %v781, 0.0
  %816 = vadd.xlane.f32.xlu0 %v815
  %v817 = vpop.xlane.xlu0 %816
  %v818 = vsel %vm304, %v782, 0.0
  %819 = vadd.xlane.f32.xlu0 %v818
  %v820 = vpop.xlane.xlu0 %819
  %v821 = vsel %vm304, %v783, 0.0
  %822 = vadd.xlane.f32.xlu0 %v821
  %v823 = vpop.xlane.xlu0 %822
  %v824 = vsel %vm304, %v784, 0.0
  %825 = vadd.xlane.f32.xlu0 %v824
  %v826 = vpop.xlane.xlu0 %825
  %v827 = vsel %vm304, %v785, 0.0
  %828 = vadd.xlane.f32.xlu0 %v827
  %v829 = vpop.xlane.xlu0 %828
  %v830 = vsel %vm304, %v786, 0.0
  %831 = vadd.xlane.f32.xlu0 %v830
  %v832 = vpop.xlane.xlu0 %831
  %v833 = vsel %vm304, %v787, 0.0
  %834 = vadd.xlane.f32.xlu0 %v833
  %v835 = vpop.xlane.xlu0 %834
  %vm836 = vcmp.ne.s32.totalorder %v154, 0
  %965 = vset.pattern.permute.xlu0 0
  %966 = vperm.xlu0 %965, %v307
  %v967 = vpop.permute.xlu0 %966
  %968 = vset.pattern.permute.xlu0 0
  %969 = vperm.xlu0 %968, %v310
  %v970 = vpop.permute.xlu0 %969
  %971 = vset.pattern.permute.xlu0 0
  %972 = vperm.xlu0 %971, %v313
  %v973 = vpop.permute.xlu0 %972
  %974 = vset.pattern.permute.xlu0 0
  %975 = vperm.xlu0 %974, %v316
  %v976 = vpop.permute.xlu0 %975
  %977 = vset.pattern.permute.xlu0 0
  %978 = vperm.xlu0 %977, %v319
  %v979 = vpop.permute.xlu0 %978
  %980 = vset.pattern.permute.xlu0 0
  %981 = vperm.xlu0 %980, %v322
  %v982 = vpop.permute.xlu0 %981
  %983 = vset.pattern.permute.xlu0 0
  %984 = vperm.xlu0 %983, %v325
  %v985 = vpop.permute.xlu0 %984
  %986 = vset.pattern.permute.xlu0 0
  %987 = vperm.xlu0 %986, %v328
  %v988 = vpop.permute.xlu0 %987
  %989 = vset.pattern.permute.xlu0 0
  %990 = vperm.xlu0 %989, %v331
  %v991 = vpop.permute.xlu0 %990
  %992 = vset.pattern.permute.xlu0 0
  %993 = vperm.xlu0 %992, %v334
  %v994 = vpop.permute.xlu0 %993
  %995 = vset.pattern.permute.xlu0 0
  %996 = vperm.xlu0 %995, %v337
  %v997 = vpop.permute.xlu0 %996
  %998 = vset.pattern.permute.xlu0 0
  %999 = vperm.xlu0 %998, %v340
  %v1000 = vpop.permute.xlu0 %999
  %1001 = vset.pattern.permute.xlu0 0
  %1002 = vperm.xlu0 %1001, %v343
  %v1003 = vpop.permute.xlu0 %1002
  %1004 = vset.pattern.permute.xlu0 0
  %1005 = vperm.xlu0 %1004, %v346
  %v1006 = vpop.permute.xlu0 %1005
  %1007 = vset.pattern.permute.xlu0 0
  %1008 = vperm.xlu0 %1007, %v349
  %v1009 = vpop.permute.xlu0 %1008
  %1010 = vset.pattern.permute.xlu0 0
  %1011 = vperm.xlu0 %1010, %v352
  %v1012 = vpop.permute.xlu0 %1011
  %1013 = vset.pattern.permute.xlu0 0
  %1014 = vperm.xlu0 %1013, %v376
  %v1015 = vpop.permute.xlu0 %1014
  %1016 = vset.pattern.permute.xlu0 0
  %1017 = vperm.xlu0 %1016, %v379
  %v1018 = vpop.permute.xlu0 %1017
  %1019 = vset.pattern.permute.xlu0 0
  %1020 = vperm.xlu0 %1019, %v382
  %v1021 = vpop.permute.xlu0 %1020
  %1022 = vset.pattern.permute.xlu0 0
  %1023 = vperm.xlu0 %1022, %v385
  %v1024 = vpop.permute.xlu0 %1023
  %1025 = vset.pattern.permute.xlu0 0
  %1026 = vperm.xlu0 %1025, %v388
  %v1027 = vpop.permute.xlu0 %1026
  %1028 = vset.pattern.permute.xlu0 0
  %1029 = vperm.xlu0 %1028, %v391
  %v1030 = vpop.permute.xlu0 %1029
  %1031 = vset.pattern.permute.xlu0 0
  %1032 = vperm.xlu0 %1031, %v394
  %v1033 = vpop.permute.xlu0 %1032
  %1034 = vset.pattern.permute.xlu0 0
  %1035 = vperm.xlu0 %1034, %v397
  %v1036 = vpop.permute.xlu0 %1035
  %1037 = vset.pattern.permute.xlu0 0
  %1038 = vperm.xlu0 %1037, %v400
  %v1039 = vpop.permute.xlu0 %1038
  %1040 = vset.pattern.permute.xlu0 0
  %1041 = vperm.xlu0 %1040, %v403
  %v1042 = vpop.permute.xlu0 %1041
  %1043 = vset.pattern.permute.xlu0 0
  %1044 = vperm.xlu0 %1043, %v406
  %v1045 = vpop.permute.xlu0 %1044
  %1046 = vset.pattern.permute.xlu0 0
  %1047 = vperm.xlu0 %1046, %v409
  %v1048 = vpop.permute.xlu0 %1047
  %1049 = vset.pattern.permute.xlu0 0
  %1050 = vperm.xlu0 %1049, %v412
  %v1051 = vpop.permute.xlu0 %1050
  %1052 = vset.pattern.permute.xlu0 0
  %1053 = vperm.xlu0 %1052, %v415
  %v1054 = vpop.permute.xlu0 %1053
  %1055 = vset.pattern.permute.xlu0 0
  %1056 = vperm.xlu0 %1055, %v418
  %v1057 = vpop.permute.xlu0 %1056
  %1058 = vset.pattern.permute.xlu0 0
  %1059 = vperm.xlu0 %1058, %v421
  %v1060 = vpop.permute.xlu0 %1059
  %1061 = vset.pattern.permute.xlu0 0
  %1062 = vperm.xlu0 %1061, %v445
  %v1063 = vpop.permute.xlu0 %1062
  %1064 = vset.pattern.permute.xlu0 0
  %1065 = vperm.xlu0 %1064, %v448
  %v1066 = vpop.permute.xlu0 %1065
  %1067 = vset.pattern.permute.xlu0 0
  %1068 = vperm.xlu0 %1067, %v451
  %v1069 = vpop.permute.xlu0 %1068
  %1070 = vset.pattern.permute.xlu0 0
  %1071 = vperm.xlu0 %1070, %v454
  %v1072 = vpop.permute.xlu0 %1071
  %1073 = vset.pattern.permute.xlu0 0
  %1074 = vperm.xlu0 %1073, %v457
  %v1075 = vpop.permute.xlu0 %1074
  %1076 = vset.pattern.permute.xlu0 0
  %1077 = vperm.xlu0 %1076, %v460
  %v1078 = vpop.permute.xlu0 %1077
  %1079 = vset.pattern.permute.xlu0 0
  %1080 = vperm.xlu0 %1079, %v463
  %v1081 = vpop.permute.xlu0 %1080
  %1082 = vset.pattern.permute.xlu0 0
  %1083 = vperm.xlu0 %1082, %v466
  %v1084 = vpop.permute.xlu0 %1083
  %1085 = vset.pattern.permute.xlu0 0
  %1086 = vperm.xlu0 %1085, %v469
  %v1087 = vpop.permute.xlu0 %1086
  %1088 = vset.pattern.permute.xlu0 0
  %1089 = vperm.xlu0 %1088, %v472
  %v1090 = vpop.permute.xlu0 %1089
  %1091 = vset.pattern.permute.xlu0 0
  %1092 = vperm.xlu0 %1091, %v475
  %v1093 = vpop.permute.xlu0 %1092
  %1094 = vset.pattern.permute.xlu0 0
  %1095 = vperm.xlu0 %1094, %v478
  %v1096 = vpop.permute.xlu0 %1095
  %1097 = vset.pattern.permute.xlu0 0
  %1098 = vperm.xlu0 %1097, %v481
  %v1099 = vpop.permute.xlu0 %1098
  %1100 = vset.pattern.permute.xlu0 0
  %1101 = vperm.xlu0 %1100, %v484
  %v1102 = vpop.permute.xlu0 %1101
  %1103 = vset.pattern.permute.xlu0 0
  %1104 = vperm.xlu0 %1103, %v487
  %v1105 = vpop.permute.xlu0 %1104
  %1106 = vset.pattern.permute.xlu0 0
  %1107 = vperm.xlu0 %1106, %v490
  %v1108 = vpop.permute.xlu0 %1107
  %1109 = vset.pattern.permute.xlu0 0
  %1110 = vperm.xlu0 %1109, %v514
  %v1111 = vpop.permute.xlu0 %1110
  %1112 = vset.pattern.permute.xlu0 0
  %1113 = vperm.xlu0 %1112, %v517
  %v1114 = vpop.permute.xlu0 %1113
  %1115 = vset.pattern.permute.xlu0 0
  %1116 = vperm.xlu0 %1115, %v520
  %v1117 = vpop.permute.xlu0 %1116
  %1118 = vset.pattern.permute.xlu0 0
  %1119 = vperm.xlu0 %1118, %v523
  %v1120 = vpop.permute.xlu0 %1119
  %1121 = vset.pattern.permute.xlu0 0
  %1122 = vperm.xlu0 %1121, %v526
  %v1123 = vpop.permute.xlu0 %1122
  %1124 = vset.pattern.permute.xlu0 0
  %1125 = vperm.xlu0 %1124, %v529
  %v1126 = vpop.permute.xlu0 %1125
  %1127 = vset.pattern.permute.xlu0 0
  %1128 = vperm.xlu0 %1127, %v532
  %v1129 = vpop.permute.xlu0 %1128
  %1130 = vset.pattern.permute.xlu0 0
  %1131 = vperm.xlu0 %1130, %v535
  %v1132 = vpop.permute.xlu0 %1131
  %1133 = vset.pattern.permute.xlu0 0
  %1134 = vperm.xlu0 %1133, %v538
  %v1135 = vpop.permute.xlu0 %1134
  %1136 = vset.pattern.permute.xlu0 0
  %1137 = vperm.xlu0 %1136, %v541
  %v1138 = vpop.permute.xlu0 %1137
  %1139 = vset.pattern.permute.xlu0 0
  %1140 = vperm.xlu0 %1139, %v544
  %v1141 = vpop.permute.xlu0 %1140
  %1142 = vset.pattern.permute.xlu0 0
  %1143 = vperm.xlu0 %1142, %v547
  %v1144 = vpop.permute.xlu0 %1143
  %1145 = vset.pattern.permute.xlu0 0
  %1146 = vperm.xlu0 %1145, %v550
  %v1147 = vpop.permute.xlu0 %1146
  %1148 = vset.pattern.permute.xlu0 0
  %1149 = vperm.xlu0 %1148, %v553
  %v1150 = vpop.permute.xlu0 %1149
  %1151 = vset.pattern.permute.xlu0 0
  %1152 = vperm.xlu0 %1151, %v556
  %v1153 = vpop.permute.xlu0 %1152
  %1154 = vset.pattern.permute.xlu0 0
  %1155 = vperm.xlu0 %1154, %v559
  %v1156 = vpop.permute.xlu0 %1155
  %1157 = vset.pattern.permute.xlu0 0
  %1158 = vperm.xlu0 %1157, %v583
  %v1159 = vpop.permute.xlu0 %1158
  %1160 = vset.pattern.permute.xlu0 0
  %1161 = vperm.xlu0 %1160, %v586
  %v1162 = vpop.permute.xlu0 %1161
  %1163 = vset.pattern.permute.xlu0 0
  %1164 = vperm.xlu0 %1163, %v589
  %v1165 = vpop.permute.xlu0 %1164
  %1166 = vset.pattern.permute.xlu0 0
  %1167 = vperm.xlu0 %1166, %v592
  %v1168 = vpop.permute.xlu0 %1167
  %1169 = vset.pattern.permute.xlu0 0
  %1170 = vperm.xlu0 %1169, %v595
  %v1171 = vpop.permute.xlu0 %1170
  %1172 = vset.pattern.permute.xlu0 0
  %1173 = vperm.xlu0 %1172, %v598
  %v1174 = vpop.permute.xlu0 %1173
  %1175 = vset.pattern.permute.xlu0 0
  %1176 = vperm.xlu0 %1175, %v601
  %v1177 = vpop.permute.xlu0 %1176
  %1178 = vset.pattern.permute.xlu0 0
  %1179 = vperm.xlu0 %1178, %v604
  %v1180 = vpop.permute.xlu0 %1179
  %1181 = vset.pattern.permute.xlu0 0
  %1182 = vperm.xlu0 %1181, %v607
  %v1183 = vpop.permute.xlu0 %1182
  %1184 = vset.pattern.permute.xlu0 0
  %1185 = vperm.xlu0 %1184, %v610
  %v1186 = vpop.permute.xlu0 %1185
  %1187 = vset.pattern.permute.xlu0 0
  %1188 = vperm.xlu0 %1187, %v613
  %v1189 = vpop.permute.xlu0 %1188
  %1190 = vset.pattern.permute.xlu0 0
  %1191 = vperm.xlu0 %1190, %v616
  %v1192 = vpop.permute.xlu0 %1191
  %1193 = vset.pattern.permute.xlu0 0
  %1194 = vperm.xlu0 %1193, %v619
  %v1195 = vpop.permute.xlu0 %1194
  %1196 = vset.pattern.permute.xlu0 0
  %1197 = vperm.xlu0 %1196, %v622
  %v1198 = vpop.permute.xlu0 %1197
  %1199 = vset.pattern.permute.xlu0 0
  %1200 = vperm.xlu0 %1199, %v625
  %v1201 = vpop.permute.xlu0 %1200
  %1202 = vset.pattern.permute.xlu0 0
  %1203 = vperm.xlu0 %1202, %v628
  %v1204 = vpop.permute.xlu0 %1203
  %1205 = vset.pattern.permute.xlu0 0
  %1206 = vperm.xlu0 %1205, %v652
  %v1207 = vpop.permute.xlu0 %1206
  %1208 = vset.pattern.permute.xlu0 0
  %1209 = vperm.xlu0 %1208, %v655
  %v1210 = vpop.permute.xlu0 %1209
  %1211 = vset.pattern.permute.xlu0 0
  %1212 = vperm.xlu0 %1211, %v658
  %v1213 = vpop.permute.xlu0 %1212
  %1214 = vset.pattern.permute.xlu0 0
  %1215 = vperm.xlu0 %1214, %v661
  %v1216 = vpop.permute.xlu0 %1215
  %1217 = vset.pattern.permute.xlu0 0
  %1218 = vperm.xlu0 %1217, %v664
  %v1219 = vpop.permute.xlu0 %1218
  %1220 = vset.pattern.permute.xlu0 0
  %1221 = vperm.xlu0 %1220, %v667
  %v1222 = vpop.permute.xlu0 %1221
  %1223 = vset.pattern.permute.xlu0 0
  %1224 = vperm.xlu0 %1223, %v670
  %v1225 = vpop.permute.xlu0 %1224
  %1226 = vset.pattern.permute.xlu0 0
  %1227 = vperm.xlu0 %1226, %v673
  %v1228 = vpop.permute.xlu0 %1227
  %1229 = vset.pattern.permute.xlu0 0
  %1230 = vperm.xlu0 %1229, %v676
  %v1231 = vpop.permute.xlu0 %1230
  %1232 = vset.pattern.permute.xlu0 0
  %1233 = vperm.xlu0 %1232, %v679
  %v1234 = vpop.permute.xlu0 %1233
  %1235 = vset.pattern.permute.xlu0 0
  %1236 = vperm.xlu0 %1235, %v682
  %v1237 = vpop.permute.xlu0 %1236
  %1238 = vset.pattern.permute.xlu0 0
  %1239 = vperm.xlu0 %1238, %v685
  %v1240 = vpop.permute.xlu0 %1239
  %1241 = vset.pattern.permute.xlu0 0
  %1242 = vperm.xlu0 %1241, %v688
  %v1243 = vpop.permute.xlu0 %1242
  %1244 = vset.pattern.permute.xlu0 0
  %1245 = vperm.xlu0 %1244, %v691
  %v1246 = vpop.permute.xlu0 %1245
  %1247 = vset.pattern.permute.xlu0 0
  %1248 = vperm.xlu0 %1247, %v694
  %v1249 = vpop.permute.xlu0 %1248
  %1250 = vset.pattern.permute.xlu0 0
  %1251 = vperm.xlu0 %1250, %v697
  %v1252 = vpop.permute.xlu0 %1251
  %1253 = vset.pattern.permute.xlu0 0
  %1254 = vperm.xlu0 %1253, %v721
  %v1255 = vpop.permute.xlu0 %1254
  %1256 = vset.pattern.permute.xlu0 0
  %1257 = vperm.xlu0 %1256, %v724
  %v1258 = vpop.permute.xlu0 %1257
  %1259 = vset.pattern.permute.xlu0 0
  %1260 = vperm.xlu0 %1259, %v727
  %v1261 = vpop.permute.xlu0 %1260
  %1262 = vset.pattern.permute.xlu0 0
  %1263 = vperm.xlu0 %1262, %v730
  %v1264 = vpop.permute.xlu0 %1263
  %1265 = vset.pattern.permute.xlu0 0
  %1266 = vperm.xlu0 %1265, %v733
  %v1267 = vpop.permute.xlu0 %1266
  %1268 = vset.pattern.permute.xlu0 0
  %1269 = vperm.xlu0 %1268, %v736
  %v1270 = vpop.permute.xlu0 %1269
  %1271 = vset.pattern.permute.xlu0 0
  %1272 = vperm.xlu0 %1271, %v739
  %v1273 = vpop.permute.xlu0 %1272
  %1274 = vset.pattern.permute.xlu0 0
  %1275 = vperm.xlu0 %1274, %v742
  %v1276 = vpop.permute.xlu0 %1275
  %1277 = vset.pattern.permute.xlu0 0
  %1278 = vperm.xlu0 %1277, %v745
  %v1279 = vpop.permute.xlu0 %1278
  %1280 = vset.pattern.permute.xlu0 0
  %1281 = vperm.xlu0 %1280, %v748
  %v1282 = vpop.permute.xlu0 %1281
  %1283 = vset.pattern.permute.xlu0 0
  %1284 = vperm.xlu0 %1283, %v751
  %v1285 = vpop.permute.xlu0 %1284
  %1286 = vset.pattern.permute.xlu0 0
  %1287 = vperm.xlu0 %1286, %v754
  %v1288 = vpop.permute.xlu0 %1287
  %1289 = vset.pattern.permute.xlu0 0
  %1290 = vperm.xlu0 %1289, %v757
  %v1291 = vpop.permute.xlu0 %1290
  %1292 = vset.pattern.permute.xlu0 0
  %1293 = vperm.xlu0 %1292, %v760
  %v1294 = vpop.permute.xlu0 %1293
  %1295 = vset.pattern.permute.xlu0 0
  %1296 = vperm.xlu0 %1295, %v763
  %v1297 = vpop.permute.xlu0 %1296
  %1298 = vset.pattern.permute.xlu0 0
  %1299 = vperm.xlu0 %1298, %v766
  %v1300 = vpop.permute.xlu0 %1299
  %1301 = vset.pattern.permute.xlu0 0
  %1302 = vperm.xlu0 %1301, %v790
  %v1303 = vpop.permute.xlu0 %1302
  %1304 = vset.pattern.permute.xlu0 0
  %1305 = vperm.xlu0 %1304, %v793
  %v1306 = vpop.permute.xlu0 %1305
  %1307 = vset.pattern.permute.xlu0 0
  %1308 = vperm.xlu0 %1307, %v796
  %v1309 = vpop.permute.xlu0 %1308
  %1310 = vset.pattern.permute.xlu0 0
  %1311 = vperm.xlu0 %1310, %v799
  %v1312 = vpop.permute.xlu0 %1311
  %1313 = vset.pattern.permute.xlu0 0
  %1314 = vperm.xlu0 %1313, %v802
  %v1315 = vpop.permute.xlu0 %1314
  %1316 = vset.pattern.permute.xlu0 0
  %1317 = vperm.xlu0 %1316, %v805
  %v1318 = vpop.permute.xlu0 %1317
  %1319 = vset.pattern.permute.xlu0 0
  %1320 = vperm.xlu0 %1319, %v808
  %v1321 = vpop.permute.xlu0 %1320
  %1322 = vset.pattern.permute.xlu0 0
  %1323 = vperm.xlu0 %1322, %v811
  %v1324 = vpop.permute.xlu0 %1323
  %1325 = vset.pattern.permute.xlu0 0
  %1326 = vperm.xlu0 %1325, %v814
  %v1327 = vpop.permute.xlu0 %1326
  %1328 = vset.pattern.permute.xlu0 0
  %1329 = vperm.xlu0 %1328, %v817
  %v1330 = vpop.permute.xlu0 %1329
  %1331 = vset.pattern.permute.xlu0 0
  %1332 = vperm.xlu0 %1331, %v820
  %v1333 = vpop.permute.xlu0 %1332
  %1334 = vset.pattern.permute.xlu0 0
  %1335 = vperm.xlu0 %1334, %v823
  %v1336 = vpop.permute.xlu0 %1335
  %1337 = vset.pattern.permute.xlu0 0
  %1338 = vperm.xlu0 %1337, %v826
  %v1339 = vpop.permute.xlu0 %1338
  %1340 = vset.pattern.permute.xlu0 0
  %1341 = vperm.xlu0 %1340, %v829
  %v1342 = vpop.permute.xlu0 %1341
  %1343 = vset.pattern.permute.xlu0 0
  %1344 = vperm.xlu0 %1343, %v832
  %v1345 = vpop.permute.xlu0 %1344
  %1346 = vset.pattern.permute.xlu0 0
  %1347 = vperm.xlu0 %1346, %v835
  %v1348 = vpop.permute.xlu0 %1347
  %v1349 = vlaneseq
  %v1350 = vand.u32 %v1349, 127
  %v1351 = vlaneseq
  %v1352 = vshrl.u32 %v1351, 7
  %v1353 = vsub.s32 %v1350, %v1352
  %v1354 = vrot.slane %v967, %v1353
  %v1355 = vadd.s32 %v1350, 4294967288
  %v1356 = vlaneseq
  %v1357 = vshrl.u32 %v1356, 7
  %v1358 = vsub.s32 %v1355, %v1357
  %v1359 = vrot.slane %v970, %v1358
  %vm1360 = vcmask 130112
  %v1361 = vsel %vm1360, %v1359, %v1354
  %v1362 = vadd.s32 %v1350, 4294967280
  %v1363 = vlaneseq
  %v1364 = vshrl.u32 %v1363, 7
  %v1365 = vsub.s32 %v1362, %v1364
  %v1366 = vrot.slane %v973, %v1365
  %vm1367 = vcmask 195712
  %v1368 = vsel %vm1367, %v1366, %v1361
  %v1369 = vadd.s32 %v1350, 4294967272
  %v1370 = vlaneseq
  %v1371 = vshrl.u32 %v1370, 7
  %v1372 = vsub.s32 %v1369, %v1371
  %v1373 = vrot.slane %v976, %v1372
  %vm1374 = vcmask 261312
  %v1375 = vsel %vm1374, %v1373, %v1368
  %v1376 = vadd.s32 %v1350, 4294967264
  %v1377 = vlaneseq
  %v1378 = vshrl.u32 %v1377, 7
  %v1379 = vsub.s32 %v1376, %v1378
  %v1380 = vrot.slane %v979, %v1379
  %vm1381 = vcmask 326912
  %v1382 = vsel %vm1381, %v1380, %v1375
  %v1383 = vadd.s32 %v1350, 4294967256
  %v1384 = vlaneseq
  %v1385 = vshrl.u32 %v1384, 7
  %v1386 = vsub.s32 %v1383, %v1385
  %v1387 = vrot.slane %v982, %v1386
  %vm1388 = vcmask 392512
  %v1389 = vsel %vm1388, %v1387, %v1382
  %v1390 = vadd.s32 %v1350, 4294967248
  %v1391 = vlaneseq
  %v1392 = vshrl.u32 %v1391, 7
  %v1393 = vsub.s32 %v1390, %v1392
  %v1394 = vrot.slane %v985, %v1393
  %vm1395 = vcmask 458112
  %v1396 = vsel %vm1395, %v1394, %v1389
  %v1397 = vadd.s32 %v1350, 4294967240
  %v1398 = vlaneseq
  %v1399 = vshrl.u32 %v1398, 7
  %v1400 = vsub.s32 %v1397, %v1399
  %v1401 = vrot.slane %v988, %v1400
  %vm1402 = vcmask 523712
  %v1403 = vsel %vm1402, %v1401, %v1396
  %v1404 = vadd.s32 %v1350, 4294967232
  %v1405 = vlaneseq
  %v1406 = vshrl.u32 %v1405, 7
  %v1407 = vsub.s32 %v1404, %v1406
  %v1408 = vrot.slane %v991, %v1407
  %vm1409 = vcmask 589312
  %v1410 = vsel %vm1409, %v1408, %v1403
  %v1411 = vadd.s32 %v1350, 4294967224
  %v1412 = vlaneseq
  %v1413 = vshrl.u32 %v1412, 7
  %v1414 = vsub.s32 %v1411, %v1413
  %v1415 = vrot.slane %v994, %v1414
  %vm1416 = vcmask 654912
  %v1417 = vsel %vm1416, %v1415, %v1410
  %v1418 = vadd.s32 %v1350, 4294967216
  %v1419 = vlaneseq
  %v1420 = vshrl.u32 %v1419, 7
  %v1421 = vsub.s32 %v1418, %v1420
  %v1422 = vrot.slane %v997, %v1421
  %vm1423 = vcmask 720512
  %v1424 = vsel %vm1423, %v1422, %v1417
  %v1425 = vadd.s32 %v1350, 4294967208
  %v1426 = vlaneseq
  %v1427 = vshrl.u32 %v1426, 7
  %v1428 = vsub.s32 %v1425, %v1427
  %v1429 = vrot.slane %v1000, %v1428
  %vm1430 = vcmask 786112
  %v1431 = vsel %vm1430, %v1429, %v1424
  %v1432 = vadd.s32 %v1350, 4294967200
  %v1433 = vlaneseq
  %v1434 = vshrl.u32 %v1433, 7
  %v1435 = vsub.s32 %v1432, %v1434
  %v1436 = vrot.slane %v1003, %v1435
  %vm1437 = vcmask 851712
  %v1438 = vsel %vm1437, %v1436, %v1431
  %v1439 = vadd.s32 %v1350, 4294967192
  %v1440 = vlaneseq
  %v1441 = vshrl.u32 %v1440, 7
  %v1442 = vsub.s32 %v1439, %v1441
  %v1443 = vrot.slane %v1006, %v1442
  %vm1444 = vcmask 917312
  %v1445 = vsel %vm1444, %v1443, %v1438
  %v1446 = vadd.s32 %v1350, 4294967184
  %v1447 = vlaneseq
  %v1448 = vshrl.u32 %v1447, 7
  %v1449 = vsub.s32 %v1446, %v1448
  %v1450 = vrot.slane %v1009, %v1449
  %vm1451 = vcmask 982912
  %v1452 = vsel %vm1451, %v1450, %v1445
  %v1453 = vadd.s32 %v1350, 4294967176
  %v1454 = vlaneseq
  %v1455 = vshrl.u32 %v1454, 7
  %v1456 = vsub.s32 %v1453, %v1455
  %v1457 = vrot.slane %v1012, %v1456
  %vm1458 = vcmask 1048512
  %v1459 = vsel %vm1458, %v1457, %v1452
  %v1460 = vlaneseq
  %v1461 = vshrl.u32 %v1460, 7
  %v1462 = vsub.s32 %v1350, %v1461
  %v1463 = vrot.slane %v1015, %v1462
  %v1464 = vlaneseq
  %v1465 = vshrl.u32 %v1464, 7
  %v1466 = vsub.s32 %v1355, %v1465
  %v1467 = vrot.slane %v1018, %v1466
  %v1468 = vsel %vm1360, %v1467, %v1463
  %v1469 = vlaneseq
  %v1470 = vshrl.u32 %v1469, 7
  %v1471 = vsub.s32 %v1362, %v1470
  %v1472 = vrot.slane %v1021, %v1471
  %v1473 = vsel %vm1367, %v1472, %v1468
  %v1474 = vlaneseq
  %v1475 = vshrl.u32 %v1474, 7
  %v1476 = vsub.s32 %v1369, %v1475
  %v1477 = vrot.slane %v1024, %v1476
  %v1478 = vsel %vm1374, %v1477, %v1473
  %v1479 = vlaneseq
  %v1480 = vshrl.u32 %v1479, 7
  %v1481 = vsub.s32 %v1376, %v1480
  %v1482 = vrot.slane %v1027, %v1481
  %v1483 = vsel %vm1381, %v1482, %v1478
  %v1484 = vlaneseq
  %v1485 = vshrl.u32 %v1484, 7
  %v1486 = vsub.s32 %v1383, %v1485
  %v1487 = vrot.slane %v1030, %v1486
  %v1488 = vsel %vm1388, %v1487, %v1483
  %v1489 = vlaneseq
  %v1490 = vshrl.u32 %v1489, 7
  %v1491 = vsub.s32 %v1390, %v1490
  %v1492 = vrot.slane %v1033, %v1491
  %v1493 = vsel %vm1395, %v1492, %v1488
  %v1494 = vlaneseq
  %v1495 = vshrl.u32 %v1494, 7
  %v1496 = vsub.s32 %v1397, %v1495
  %v1497 = vrot.slane %v1036, %v1496
  %v1498 = vsel %vm1402, %v1497, %v1493
  %v1499 = vlaneseq
  %v1500 = vshrl.u32 %v1499, 7
  %v1501 = vsub.s32 %v1404, %v1500
  %v1502 = vrot.slane %v1039, %v1501
  %v1503 = vsel %vm1409, %v1502, %v1498
  %v1504 = vlaneseq
  %v1505 = vshrl.u32 %v1504, 7
  %v1506 = vsub.s32 %v1411, %v1505
  %v1507 = vrot.slane %v1042, %v1506
  %v1508 = vsel %vm1416, %v1507, %v1503
  %v1509 = vlaneseq
  %v1510 = vshrl.u32 %v1509, 7
  %v1511 = vsub.s32 %v1418, %v1510
  %v1512 = vrot.slane %v1045, %v1511
  %v1513 = vsel %vm1423, %v1512, %v1508
  %v1514 = vlaneseq
  %v1515 = vshrl.u32 %v1514, 7
  %v1516 = vsub.s32 %v1425, %v1515
  %v1517 = vrot.slane %v1048, %v1516
  %v1518 = vsel %vm1430, %v1517, %v1513
  %v1519 = vlaneseq
  %v1520 = vshrl.u32 %v1519, 7
  %v1521 = vsub.s32 %v1432, %v1520
  %v1522 = vrot.slane %v1051, %v1521
  %v1523 = vsel %vm1437, %v1522, %v1518
  %v1524 = vlaneseq
  %v1525 = vshrl.u32 %v1524, 7
  %v1526 = vsub.s32 %v1439, %v1525
  %v1527 = vrot.slane %v1054, %v1526
  %v1528 = vsel %vm1444, %v1527, %v1523
  %v1529 = vlaneseq
  %v1530 = vshrl.u32 %v1529, 7
  %v1531 = vsub.s32 %v1446, %v1530
  %v1532 = vrot.slane %v1057, %v1531
  %v1533 = vsel %vm1451, %v1532, %v1528
  %v1534 = vlaneseq
  %v1535 = vshrl.u32 %v1534, 7
  %v1536 = vsub.s32 %v1453, %v1535
  %v1537 = vrot.slane %v1060, %v1536
  %v1538 = vsel %vm1458, %v1537, %v1533
  %v1539 = vlaneseq
  %v1540 = vshrl.u32 %v1539, 7
  %v1541 = vsub.s32 %v1350, %v1540
  %v1542 = vrot.slane %v1063, %v1541
  %v1543 = vlaneseq
  %v1544 = vshrl.u32 %v1543, 7
  %v1545 = vsub.s32 %v1355, %v1544
  %v1546 = vrot.slane %v1066, %v1545
  %v1547 = vsel %vm1360, %v1546, %v1542
  %v1548 = vlaneseq
  %v1549 = vshrl.u32 %v1548, 7
  %v1550 = vsub.s32 %v1362, %v1549
  %v1551 = vrot.slane %v1069, %v1550
  %v1552 = vsel %vm1367, %v1551, %v1547
  %v1553 = vlaneseq
  %v1554 = vshrl.u32 %v1553, 7
  %v1555 = vsub.s32 %v1369, %v1554
  %v1556 = vrot.slane %v1072, %v1555
  %v1557 = vsel %vm1374, %v1556, %v1552
  %v1558 = vlaneseq
  %v1559 = vshrl.u32 %v1558, 7
  %v1560 = vsub.s32 %v1376, %v1559
  %v1561 = vrot.slane %v1075, %v1560
  %v1562 = vsel %vm1381, %v1561, %v1557
  %v1563 = vlaneseq
  %v1564 = vshrl.u32 %v1563, 7
  %v1565 = vsub.s32 %v1383, %v1564
  %v1566 = vrot.slane %v1078, %v1565
  %v1567 = vsel %vm1388, %v1566, %v1562
  %v1568 = vlaneseq
  %v1569 = vshrl.u32 %v1568, 7
  %v1570 = vsub.s32 %v1390, %v1569
  %v1571 = vrot.slane %v1081, %v1570
  %v1572 = vsel %vm1395, %v1571, %v1567
  %v1573 = vlaneseq
  %v1574 = vshrl.u32 %v1573, 7
  %v1575 = vsub.s32 %v1397, %v1574
  %v1576 = vrot.slane %v1084, %v1575
  %v1577 = vsel %vm1402, %v1576, %v1572
  %v1578 = vlaneseq
  %v1579 = vshrl.u32 %v1578, 7
  %v1580 = vsub.s32 %v1404, %v1579
  %v1581 = vrot.slane %v1087, %v1580
  %v1582 = vsel %vm1409, %v1581, %v1577
  %v1583 = vlaneseq
  %v1584 = vshrl.u32 %v1583, 7
  %v1585 = vsub.s32 %v1411, %v1584
  %v1586 = vrot.slane %v1090, %v1585
  %v1587 = vsel %vm1416, %v1586, %v1582
  %v1588 = vlaneseq
  %v1589 = vshrl.u32 %v1588, 7
  %v1590 = vsub.s32 %v1418, %v1589
  %v1591 = vrot.slane %v1093, %v1590
  %v1592 = vsel %vm1423, %v1591, %v1587
  %v1593 = vlaneseq
  %v1594 = vshrl.u32 %v1593, 7
  %v1595 = vsub.s32 %v1425, %v1594
  %v1596 = vrot.slane %v1096, %v1595
  %v1597 = vsel %vm1430, %v1596, %v1592
  %v1598 = vlaneseq
  %v1599 = vshrl.u32 %v1598, 7
  %v1600 = vsub.s32 %v1432, %v1599
  %v1601 = vrot.slane %v1099, %v1600
  %v1602 = vsel %vm1437, %v1601, %v1597
  %v1603 = vlaneseq
  %v1604 = vshrl.u32 %v1603, 7
  %v1605 = vsub.s32 %v1439, %v1604
  %v1606 = vrot.slane %v1102, %v1605
  %v1607 = vsel %vm1444, %v1606, %v1602
  %v1608 = vlaneseq
  %v1609 = vshrl.u32 %v1608, 7
  %v1610 = vsub.s32 %v1446, %v1609
  %v1611 = vrot.slane %v1105, %v1610
  %v1612 = vsel %vm1451, %v1611, %v1607
  %v1613 = vlaneseq
  %v1614 = vshrl.u32 %v1613, 7
  %v1615 = vsub.s32 %v1453, %v1614
  %v1616 = vrot.slane %v1108, %v1615
  %v1617 = vsel %vm1458, %v1616, %v1612
  %v1618 = vlaneseq
  %v1619 = vshrl.u32 %v1618, 7
  %v1620 = vsub.s32 %v1350, %v1619
  %v1621 = vrot.slane %v1111, %v1620
  %v1622 = vlaneseq
  %v1623 = vshrl.u32 %v1622, 7
  %v1624 = vsub.s32 %v1355, %v1623
  %v1625 = vrot.slane %v1114, %v1624
  %v1626 = vsel %vm1360, %v1625, %v1621
  %v1627 = vlaneseq
  %v1628 = vshrl.u32 %v1627, 7
  %v1629 = vsub.s32 %v1362, %v1628
  %v1630 = vrot.slane %v1117, %v1629
  %v1631 = vsel %vm1367, %v1630, %v1626
  %v1632 = vlaneseq
  %v1633 = vshrl.u32 %v1632, 7
  %v1634 = vsub.s32 %v1369, %v1633
  %v1635 = vrot.slane %v1120, %v1634
  %v1636 = vsel %vm1374, %v1635, %v1631
  %v1637 = vlaneseq
  %v1638 = vshrl.u32 %v1637, 7
  %v1639 = vsub.s32 %v1376, %v1638
  %v1640 = vrot.slane %v1123, %v1639
  %v1641 = vsel %vm1381, %v1640, %v1636
  %v1642 = vlaneseq
  %v1643 = vshrl.u32 %v1642, 7
  %v1644 = vsub.s32 %v1383, %v1643
  %v1645 = vrot.slane %v1126, %v1644
  %v1646 = vsel %vm1388, %v1645, %v1641
  %v1647 = vlaneseq
  %v1648 = vshrl.u32 %v1647, 7
  %v1649 = vsub.s32 %v1390, %v1648
  %v1650 = vrot.slane %v1129, %v1649
  %v1651 = vsel %vm1395, %v1650, %v1646
  %v1652 = vlaneseq
  %v1653 = vshrl.u32 %v1652, 7
  %v1654 = vsub.s32 %v1397, %v1653
  %v1655 = vrot.slane %v1132, %v1654
  %v1656 = vsel %vm1402, %v1655, %v1651
  %v1657 = vlaneseq
  %v1658 = vshrl.u32 %v1657, 7
  %v1659 = vsub.s32 %v1404, %v1658
  %v1660 = vrot.slane %v1135, %v1659
  %v1661 = vsel %vm1409, %v1660, %v1656
  %v1662 = vlaneseq
  %v1663 = vshrl.u32 %v1662, 7
  %v1664 = vsub.s32 %v1411, %v1663
  %v1665 = vrot.slane %v1138, %v1664
  %v1666 = vsel %vm1416, %v1665, %v1661
  %v1667 = vlaneseq
  %v1668 = vshrl.u32 %v1667, 7
  %v1669 = vsub.s32 %v1418, %v1668
  %v1670 = vrot.slane %v1141, %v1669
  %v1671 = vsel %vm1423, %v1670, %v1666
  %v1672 = vlaneseq
  %v1673 = vshrl.u32 %v1672, 7
  %v1674 = vsub.s32 %v1425, %v1673
  %v1675 = vrot.slane %v1144, %v1674
  %v1676 = vsel %vm1430, %v1675, %v1671
  %v1677 = vlaneseq
  %v1678 = vshrl.u32 %v1677, 7
  %v1679 = vsub.s32 %v1432, %v1678
  %v1680 = vrot.slane %v1147, %v1679
  %v1681 = vsel %vm1437, %v1680, %v1676
  %v1682 = vlaneseq
  %v1683 = vshrl.u32 %v1682, 7
  %v1684 = vsub.s32 %v1439, %v1683
  %v1685 = vrot.slane %v1150, %v1684
  %v1686 = vsel %vm1444, %v1685, %v1681
  %v1687 = vlaneseq
  %v1688 = vshrl.u32 %v1687, 7
  %v1689 = vsub.s32 %v1446, %v1688
  %v1690 = vrot.slane %v1153, %v1689
  %v1691 = vsel %vm1451, %v1690, %v1686
  %v1692 = vlaneseq
  %v1693 = vshrl.u32 %v1692, 7
  %v1694 = vsub.s32 %v1453, %v1693
  %v1695 = vrot.slane %v1156, %v1694
  %v1696 = vsel %vm1458, %v1695, %v1691
  %v1697 = vlaneseq
  %v1698 = vshrl.u32 %v1697, 7
  %v1699 = vsub.s32 %v1350, %v1698
  %v1700 = vrot.slane %v1159, %v1699
  %v1701 = vlaneseq
  %v1702 = vshrl.u32 %v1701, 7
  %v1703 = vsub.s32 %v1355, %v1702
  %v1704 = vrot.slane %v1162, %v1703
  %v1705 = vsel %vm1360, %v1704, %v1700
  %v1706 = vlaneseq
  %v1707 = vshrl.u32 %v1706, 7
  %v1708 = vsub.s32 %v1362, %v1707
  %v1709 = vrot.slane %v1165, %v1708
  %v1710 = vsel %vm1367, %v1709, %v1705
  %v1711 = vlaneseq
  %v1712 = vshrl.u32 %v1711, 7
  %v1713 = vsub.s32 %v1369, %v1712
  %v1714 = vrot.slane %v1168, %v1713
  %v1715 = vsel %vm1374, %v1714, %v1710
  %v1716 = vlaneseq
  %v1717 = vshrl.u32 %v1716, 7
  %v1718 = vsub.s32 %v1376, %v1717
  %v1719 = vrot.slane %v1171, %v1718
  %v1720 = vsel %vm1381, %v1719, %v1715
  %v1721 = vlaneseq
  %v1722 = vshrl.u32 %v1721, 7
  %v1723 = vsub.s32 %v1383, %v1722
  %v1724 = vrot.slane %v1174, %v1723
  %v1725 = vsel %vm1388, %v1724, %v1720
  %v1726 = vlaneseq
  %v1727 = vshrl.u32 %v1726, 7
  %v1728 = vsub.s32 %v1390, %v1727
  %v1729 = vrot.slane %v1177, %v1728
  %v1730 = vsel %vm1395, %v1729, %v1725
  %v1731 = vlaneseq
  %v1732 = vshrl.u32 %v1731, 7
  %v1733 = vsub.s32 %v1397, %v1732
  %v1734 = vrot.slane %v1180, %v1733
  %v1735 = vsel %vm1402, %v1734, %v1730
  %v1736 = vlaneseq
  %v1737 = vshrl.u32 %v1736, 7
  %v1738 = vsub.s32 %v1404, %v1737
  %v1739 = vrot.slane %v1183, %v1738
  %v1740 = vsel %vm1409, %v1739, %v1735
  %v1741 = vlaneseq
  %v1742 = vshrl.u32 %v1741, 7
  %v1743 = vsub.s32 %v1411, %v1742
  %v1744 = vrot.slane %v1186, %v1743
  %v1745 = vsel %vm1416, %v1744, %v1740
  %v1746 = vlaneseq
  %v1747 = vshrl.u32 %v1746, 7
  %v1748 = vsub.s32 %v1418, %v1747
  %v1749 = vrot.slane %v1189, %v1748
  %v1750 = vsel %vm1423, %v1749, %v1745
  %v1751 = vlaneseq
  %v1752 = vshrl.u32 %v1751, 7
  %v1753 = vsub.s32 %v1425, %v1752
  %v1754 = vrot.slane %v1192, %v1753
  %v1755 = vsel %vm1430, %v1754, %v1750
  %v1756 = vlaneseq
  %v1757 = vshrl.u32 %v1756, 7
  %v1758 = vsub.s32 %v1432, %v1757
  %v1759 = vrot.slane %v1195, %v1758
  %v1760 = vsel %vm1437, %v1759, %v1755
  %v1761 = vlaneseq
  %v1762 = vshrl.u32 %v1761, 7
  %v1763 = vsub.s32 %v1439, %v1762
  %v1764 = vrot.slane %v1198, %v1763
  %v1765 = vsel %vm1444, %v1764, %v1760
  %v1766 = vlaneseq
  %v1767 = vshrl.u32 %v1766, 7
  %v1768 = vsub.s32 %v1446, %v1767
  %v1769 = vrot.slane %v1201, %v1768
  %v1770 = vsel %vm1451, %v1769, %v1765
  %v1771 = vlaneseq
  %v1772 = vshrl.u32 %v1771, 7
  %v1773 = vsub.s32 %v1453, %v1772
  %v1774 = vrot.slane %v1204, %v1773
  %v1775 = vsel %vm1458, %v1774, %v1770
  %v1776 = vlaneseq
  %v1777 = vshrl.u32 %v1776, 7
  %v1778 = vsub.s32 %v1350, %v1777
  %v1779 = vrot.slane %v1207, %v1778
  %v1780 = vlaneseq
  %v1781 = vshrl.u32 %v1780, 7
  %v1782 = vsub.s32 %v1355, %v1781
  %v1783 = vrot.slane %v1210, %v1782
  %v1784 = vsel %vm1360, %v1783, %v1779
  %v1785 = vlaneseq
  %v1786 = vshrl.u32 %v1785, 7
  %v1787 = vsub.s32 %v1362, %v1786
  %v1788 = vrot.slane %v1213, %v1787
  %v1789 = vsel %vm1367, %v1788, %v1784
  %v1790 = vlaneseq
  %v1791 = vshrl.u32 %v1790, 7
  %v1792 = vsub.s32 %v1369, %v1791
  %v1793 = vrot.slane %v1216, %v1792
  %v1794 = vsel %vm1374, %v1793, %v1789
  %v1795 = vlaneseq
  %v1796 = vshrl.u32 %v1795, 7
  %v1797 = vsub.s32 %v1376, %v1796
  %v1798 = vrot.slane %v1219, %v1797
  %v1799 = vsel %vm1381, %v1798, %v1794
  %v1800 = vlaneseq
  %v1801 = vshrl.u32 %v1800, 7
  %v1802 = vsub.s32 %v1383, %v1801
  %v1803 = vrot.slane %v1222, %v1802
  %v1804 = vsel %vm1388, %v1803, %v1799
  %v1805 = vlaneseq
  %v1806 = vshrl.u32 %v1805, 7
  %v1807 = vsub.s32 %v1390, %v1806
  %v1808 = vrot.slane %v1225, %v1807
  %v1809 = vsel %vm1395, %v1808, %v1804
  %v1810 = vlaneseq
  %v1811 = vshrl.u32 %v1810, 7
  %v1812 = vsub.s32 %v1397, %v1811
  %v1813 = vrot.slane %v1228, %v1812
  %v1814 = vsel %vm1402, %v1813, %v1809
  %v1815 = vlaneseq
  %v1816 = vshrl.u32 %v1815, 7
  %v1817 = vsub.s32 %v1404, %v1816
  %v1818 = vrot.slane %v1231, %v1817
  %v1819 = vsel %vm1409, %v1818, %v1814
  %v1820 = vlaneseq
  %v1821 = vshrl.u32 %v1820, 7
  %v1822 = vsub.s32 %v1411, %v1821
  %v1823 = vrot.slane %v1234, %v1822
  %v1824 = vsel %vm1416, %v1823, %v1819
  %v1825 = vlaneseq
  %v1826 = vshrl.u32 %v1825, 7
  %v1827 = vsub.s32 %v1418, %v1826
  %v1828 = vrot.slane %v1237, %v1827
  %v1829 = vsel %vm1423, %v1828, %v1824
  %v1830 = vlaneseq
  %v1831 = vshrl.u32 %v1830, 7
  %v1832 = vsub.s32 %v1425, %v1831
  %v1833 = vrot.slane %v1240, %v1832
  %v1834 = vsel %vm1430, %v1833, %v1829
  %v1835 = vlaneseq
  %v1836 = vshrl.u32 %v1835, 7
  %v1837 = vsub.s32 %v1432, %v1836
  %v1838 = vrot.slane %v1243, %v1837
  %v1839 = vsel %vm1437, %v1838, %v1834
  %v1840 = vlaneseq
  %v1841 = vshrl.u32 %v1840, 7
  %v1842 = vsub.s32 %v1439, %v1841
  %v1843 = vrot.slane %v1246, %v1842
  %v1844 = vsel %vm1444, %v1843, %v1839
  %v1845 = vlaneseq
  %v1846 = vshrl.u32 %v1845, 7
  %v1847 = vsub.s32 %v1446, %v1846
  %v1848 = vrot.slane %v1249, %v1847
  %v1849 = vsel %vm1451, %v1848, %v1844
  %v1850 = vlaneseq
  %v1851 = vshrl.u32 %v1850, 7
  %v1852 = vsub.s32 %v1453, %v1851
  %v1853 = vrot.slane %v1252, %v1852
  %v1854 = vsel %vm1458, %v1853, %v1849
  %v1855 = vlaneseq
  %v1856 = vshrl.u32 %v1855, 7
  %v1857 = vsub.s32 %v1350, %v1856
  %v1858 = vrot.slane %v1255, %v1857
  %v1859 = vlaneseq
  %v1860 = vshrl.u32 %v1859, 7
  %v1861 = vsub.s32 %v1355, %v1860
  %v1862 = vrot.slane %v1258, %v1861
  %v1863 = vsel %vm1360, %v1862, %v1858
  %v1864 = vlaneseq
  %v1865 = vshrl.u32 %v1864, 7
  %v1866 = vsub.s32 %v1362, %v1865
  %v1867 = vrot.slane %v1261, %v1866
  %v1868 = vsel %vm1367, %v1867, %v1863
  %v1869 = vlaneseq
  %v1870 = vshrl.u32 %v1869, 7
  %v1871 = vsub.s32 %v1369, %v1870
  %v1872 = vrot.slane %v1264, %v1871
  %v1873 = vsel %vm1374, %v1872, %v1868
  %v1874 = vlaneseq
  %v1875 = vshrl.u32 %v1874, 7
  %v1876 = vsub.s32 %v1376, %v1875
  %v1877 = vrot.slane %v1267, %v1876
  %v1878 = vsel %vm1381, %v1877, %v1873
  %v1879 = vlaneseq
  %v1880 = vshrl.u32 %v1879, 7
  %v1881 = vsub.s32 %v1383, %v1880
  %v1882 = vrot.slane %v1270, %v1881
  %v1883 = vsel %vm1388, %v1882, %v1878
  %v1884 = vlaneseq
  %v1885 = vshrl.u32 %v1884, 7
  %v1886 = vsub.s32 %v1390, %v1885
  %v1887 = vrot.slane %v1273, %v1886
  %v1888 = vsel %vm1395, %v1887, %v1883
  %v1889 = vlaneseq
  %v1890 = vshrl.u32 %v1889, 7
  %v1891 = vsub.s32 %v1397, %v1890
  %v1892 = vrot.slane %v1276, %v1891
  %v1893 = vsel %vm1402, %v1892, %v1888
  %v1894 = vlaneseq
  %v1895 = vshrl.u32 %v1894, 7
  %v1896 = vsub.s32 %v1404, %v1895
  %v1897 = vrot.slane %v1279, %v1896
  %v1898 = vsel %vm1409, %v1897, %v1893
  %v1899 = vlaneseq
  %v1900 = vshrl.u32 %v1899, 7
  %v1901 = vsub.s32 %v1411, %v1900
  %v1902 = vrot.slane %v1282, %v1901
  %v1903 = vsel %vm1416, %v1902, %v1898
  %v1904 = vlaneseq
  %v1905 = vshrl.u32 %v1904, 7
  %v1906 = vsub.s32 %v1418, %v1905
  %v1907 = vrot.slane %v1285, %v1906
  %v1908 = vsel %vm1423, %v1907, %v1903
  %v1909 = vlaneseq
  %v1910 = vshrl.u32 %v1909, 7
  %v1911 = vsub.s32 %v1425, %v1910
  %v1912 = vrot.slane %v1288, %v1911
  %v1913 = vsel %vm1430, %v1912, %v1908
  %v1914 = vlaneseq
  %v1915 = vshrl.u32 %v1914, 7
  %v1916 = vsub.s32 %v1432, %v1915
  %v1917 = vrot.slane %v1291, %v1916
  %v1918 = vsel %vm1437, %v1917, %v1913
  %v1919 = vlaneseq
  %v1920 = vshrl.u32 %v1919, 7
  %v1921 = vsub.s32 %v1439, %v1920
  %v1922 = vrot.slane %v1294, %v1921
  %v1923 = vsel %vm1444, %v1922, %v1918
  %v1924 = vlaneseq
  %v1925 = vshrl.u32 %v1924, 7
  %v1926 = vsub.s32 %v1446, %v1925
  %v1927 = vrot.slane %v1297, %v1926
  %v1928 = vsel %vm1451, %v1927, %v1923
  %v1929 = vlaneseq
  %v1930 = vshrl.u32 %v1929, 7
  %v1931 = vsub.s32 %v1453, %v1930
  %v1932 = vrot.slane %v1300, %v1931
  %v1933 = vsel %vm1458, %v1932, %v1928
  %v1934 = vlaneseq
  %v1935 = vshrl.u32 %v1934, 7
  %v1936 = vsub.s32 %v1350, %v1935
  %v1937 = vrot.slane %v1303, %v1936
  %v1938 = vlaneseq
  %v1939 = vshrl.u32 %v1938, 7
  %v1940 = vsub.s32 %v1355, %v1939
  %v1941 = vrot.slane %v1306, %v1940
  %v1942 = vsel %vm1360, %v1941, %v1937
  %v1943 = vlaneseq
  %v1944 = vshrl.u32 %v1943, 7
  %v1945 = vsub.s32 %v1362, %v1944
  %v1946 = vrot.slane %v1309, %v1945
  %v1947 = vsel %vm1367, %v1946, %v1942
  %v1948 = vlaneseq
  %v1949 = vshrl.u32 %v1948, 7
  %v1950 = vsub.s32 %v1369, %v1949
  %v1951 = vrot.slane %v1312, %v1950
  %v1952 = vsel %vm1374, %v1951, %v1947
  %v1953 = vlaneseq
  %v1954 = vshrl.u32 %v1953, 7
  %v1955 = vsub.s32 %v1376, %v1954
  %v1956 = vrot.slane %v1315, %v1955
  %v1957 = vsel %vm1381, %v1956, %v1952
  %v1958 = vlaneseq
  %v1959 = vshrl.u32 %v1958, 7
  %v1960 = vsub.s32 %v1383, %v1959
  %v1961 = vrot.slane %v1318, %v1960
  %v1962 = vsel %vm1388, %v1961, %v1957
  %v1963 = vlaneseq
  %v1964 = vshrl.u32 %v1963, 7
  %v1965 = vsub.s32 %v1390, %v1964
  %v1966 = vrot.slane %v1321, %v1965
  %v1967 = vsel %vm1395, %v1966, %v1962
  %v1968 = vlaneseq
  %v1969 = vshrl.u32 %v1968, 7
  %v1970 = vsub.s32 %v1397, %v1969
  %v1971 = vrot.slane %v1324, %v1970
  %v1972 = vsel %vm1402, %v1971, %v1967
  %v1973 = vlaneseq
  %v1974 = vshrl.u32 %v1973, 7
  %v1975 = vsub.s32 %v1404, %v1974
  %v1976 = vrot.slane %v1327, %v1975
  %v1977 = vsel %vm1409, %v1976, %v1972
  %v1978 = vlaneseq
  %v1979 = vshrl.u32 %v1978, 7
  %v1980 = vsub.s32 %v1411, %v1979
  %v1981 = vrot.slane %v1330, %v1980
  %v1982 = vsel %vm1416, %v1981, %v1977
  %v1983 = vlaneseq
  %v1984 = vshrl.u32 %v1983, 7
  %v1985 = vsub.s32 %v1418, %v1984
  %v1986 = vrot.slane %v1333, %v1985
  %v1987 = vsel %vm1423, %v1986, %v1982
  %v1988 = vlaneseq
  %v1989 = vshrl.u32 %v1988, 7
  %v1990 = vsub.s32 %v1425, %v1989
  %v1991 = vrot.slane %v1336, %v1990
  %v1992 = vsel %vm1430, %v1991, %v1987
  %v1993 = vlaneseq
  %v1994 = vshrl.u32 %v1993, 7
  %v1995 = vsub.s32 %v1432, %v1994
  %v1996 = vrot.slane %v1339, %v1995
  %v1997 = vsel %vm1437, %v1996, %v1992
  %v1998 = vlaneseq
  %v1999 = vshrl.u32 %v1998, 7
  %v2000 = vsub.s32 %v1439, %v1999
  %v2001 = vrot.slane %v1342, %v2000
  %v2002 = vsel %vm1444, %v2001, %v1997
  %v2003 = vlaneseq
  %v2004 = vshrl.u32 %v2003, 7
  %v2005 = vsub.s32 %v1446, %v2004
  %v2006 = vrot.slane %v1345, %v2005
  %v2007 = vsel %vm1451, %v2006, %v2002
  %v2008 = vlaneseq
  %v2009 = vshrl.u32 %v2008, 7
  %v2010 = vsub.s32 %v1453, %v2009
  %v2011 = vrot.slane %v1348, %v2010
  %v2012 = vsel %vm1458, %v2011, %v2007
  %vm2013 = vcmask 1041409
  %v2014 = vsel %vm2013, %v1538, %v1459
  %vm2015 = vcmask 1042434
  %v2016 = vsel %vm2015, %v1617, %v2014
  %vm2017 = vcmask 1043459
  %v2018 = vsel %vm2017, %v1696, %v2016
  %vm2019 = vcmask 1044484
  %v2020 = vsel %vm2019, %v1775, %v2018
  %vm2021 = vcmask 1045509
  %v2022 = vsel %vm2021, %v1854, %v2020
  %vm2023 = vcmask 1046534
  %v2024 = vsel %vm2023, %v1933, %v2022
  %vm2025 = vcmask 1047559
  %v2026 = vsel %vm2025, %v2012, %v2024
  %v2028 = vsel %vm836, -1e+30, %v2026
  %2029 = vmax.xlane.f32.xlu0 %v2028
  %v2030 = vpop.xlane.xlu0 %2029
  %v2031 = vsub.f32 %v2028, %v2030
  %v2032 = vmul.f32 %v2031, 1.442695
  %v2033 = vpow.pop %v2032
  %2034 = vadd.xlane.f32.xlu0 %v2033
  %v2035 = vpop.xlane.xlu0 %2034
  %v2036 = vrcp.pop %v2035
  %v2037 = vmul.f32 %v2033, %v2036
  %2038 = vst [vmem:[%s7] sm:$0xff] %v2037
  %v2040 = vcombine.high %v2037, %v2037
  %v2042 = vunpack.c.l.s4 1966171168
  %v2043 = vunpack.c.0.s8 %v2042
  %v2044 = vlaneseq
  %v2045 = vshrl.u32 %v2044, 7
  %v2046 = vsub.s32 %v2043, %v2045
  %v2047 = vrot.slane %v2037, %v2046
  %v2049 = vunpack.c.l.s4 1966171168
  %v2050 = vunpack.c.0.s8 %v2049
  %v2051 = vlaneseq
  %v2052 = vshrl.u32 %v2051, 7
  %v2053 = vsub.s32 %v2050, %v2052
  %v2054 = vrot.slane %v2040, %v2053
  %v2055 = vcombine.high %v2047, %v2047
  %v2056 = vcombine.high %v2054, %v2054
  %v2058 = vunpack.c.l.s4 1966171168
  %v2059 = vunpack.c.0.s8 %v2058
  %v2060 = vlaneseq
  %v2061 = vshrl.u32 %v2060, 7
  %v2062 = vsub.s32 %v2059, %v2061
  %v2063 = vrot.slane %v2047, %v2062
  %v2065 = vunpack.c.l.s4 1966171168
  %v2066 = vunpack.c.0.s8 %v2065
  %v2067 = vlaneseq
  %v2068 = vshrl.u32 %v2067, 7
  %v2069 = vsub.s32 %v2066, %v2068
  %v2070 = vrot.slane %v2054, %v2069
  %v2072 = vunpack.c.l.s4 1966171168
  %v2073 = vunpack.c.0.s8 %v2072
  %v2074 = vlaneseq
  %v2075 = vshrl.u32 %v2074, 7
  %v2076 = vsub.s32 %v2073, %v2075
  %v2077 = vrot.slane %v2055, %v2076
  %v2079 = vunpack.c.l.s4 1966171168
  %v2080 = vunpack.c.0.s8 %v2079
  %v2081 = vlaneseq
  %v2082 = vshrl.u32 %v2081, 7
  %v2083 = vsub.s32 %v2080, %v2082
  %v2084 = vrot.slane %v2056, %v2083
  %v2085 = vcombine.high %v2063, %v2063
  %v2086 = vcombine.high %v2070, %v2070
  %v2087 = vcombine.high %v2077, %v2077
  %v2088 = vcombine.high %v2084, %v2084
  %2097 = vmatprep.subr.mxu0 0.0
  %2098 = vmatpush1.msra.mxu0 %v41
  %2099 = vmatprep.subr.mxu0 0.0
  %2100 = vmatpush1.msra.mxu0 %v40
  %2101 = vmatprep.subr.mxu0 0.0
  %2102 = vmatpush1.msra.mxu0 %v39
  %2103 = vmatprep.subr.mxu0 0.0
  %2104 = vmatpush1.msra.mxu0 %v38
  %2105 = vmatprep.subr.mxu0 0.0
  %2106 = vmatpush1.msra.mxu0 %v37
  %2107 = vmatprep.subr.mxu0 0.0
  %2108 = vmatpush1.msra.mxu0 %v36
  %2109 = vmatprep.subr.mxu0 0.0
  %2110 = vmatpush1.msra.mxu0 %v35
  %2111 = vmatprep.subr.mxu0 0.0
  %2112 = vmatpush1.msra.mxu0 %v34
  %2113 = vmatprep.subr.mxu0 0.0
  %2114 = vmatpush1.msra.mxu0 %v33
  %2115 = vmatprep.subr.mxu0 0.0
  %2116 = vmatpush1.msra.mxu0 %v32
  %2117 = vmatprep.subr.mxu0 0.0
  %2118 = vmatpush1.msra.mxu0 %v31
  %2119 = vmatprep.subr.mxu0 0.0
  %2120 = vmatpush1.msra.mxu0 %v30
  %2121 = vmatprep.subr.mxu0 0.0
  %2122 = vmatpush1.msra.mxu0 %v29
  %2123 = vmatprep.subr.mxu0 0.0
  %2124 = vmatpush1.msra.mxu0 %v28
  %2125 = vmatprep.subr.mxu0 0.0
  %2126 = vmatpush1.msra.mxu0 %v27
  %2127 = vmatprep.subr.mxu0 0.0
  %2128 = vmatpush1.msra.mxu0 %v26
  %2129 = vmatprep.subr.mxu0 0.0
  %2130 = vmatpush2.msra.mxu0 0.0
  %2131 = vmatprep.subr.mxu0 0.0
  %2132 = vmatpush2.msra.mxu0 0.0
  %2133 = vmatprep.subr.mxu0 0.0
  %2134 = vmatpush2.msra.mxu0 0.0
  %2135 = vmatprep.subr.mxu0 0.0
  %2136 = vmatpush2.msra.mxu0 0.0
  %2137 = vmatprep.subr.mxu0 0.0
  %2138 = vmatpush2.msra.mxu0 0.0
  %2139 = vmatprep.subr.mxu0 0.0
  %2140 = vmatpush2.msra.mxu0 0.0
  %2141 = vmatprep.subr.mxu0 0.0
  %2142 = vmatpush2.msra.mxu0 0.0
  %2143 = vmatprep.subr.mxu0 0.0
  %2144 = vmatpush2.msra.mxu0 0.0
  %2145 = vmatprep.subr.mxu0 0.0
  %2146 = vmatpush2.msra.mxu0 0.0
  %2147 = vmatprep.subr.mxu0 0.0
  %2148 = vmatpush2.msra.mxu0 0.0
  %2149 = vmatprep.subr.mxu0 0.0
  %2150 = vmatpush2.msra.mxu0 0.0
  %2151 = vmatprep.subr.mxu0 0.0
  %2152 = vmatpush2.msra.mxu0 0.0
  %2153 = vmatprep.subr.mxu0 0.0
  %2154 = vmatpush2.msra.mxu0 0.0
  %2155 = vmatprep.subr.mxu0 0.0
  %2156 = vmatpush2.msra.mxu0 0.0
  %2157 = vmatprep.subr.mxu0 0.0
  %2158 = vmatpush2.msra.mxu0 0.0
  %2159 = vmatprep.subr.mxu0 0.0
  %2160 = vmatpush2.msra.mxu0 0.0
  %2161 = vmatprep.mubr.f32.mxu0 0.0
  %2162 = vmatmul.mubr.f32.gmra.mxu0 %v2063
  %v2163 = vpop.f32.mrf.mxu0
  %v2164 = vadd.f32 0.0, %v2163
  %v2165 = vpop.f32.mrf.mxu0
  %2166 = vdwg.mxu0
  %2167 = vmatprep.subr.mxu0 0.0
  %2168 = vmatpush1.msra.mxu0 %v57
  %2169 = vmatprep.subr.mxu0 0.0
  %2170 = vmatpush1.msra.mxu0 %v56
  %2171 = vmatprep.subr.mxu0 0.0
  %2172 = vmatpush1.msra.mxu0 %v55
  %2173 = vmatprep.subr.mxu0 0.0
  %2174 = vmatpush1.msra.mxu0 %v54
  %2175 = vmatprep.subr.mxu0 0.0
  %2176 = vmatpush1.msra.mxu0 %v53
  %2177 = vmatprep.subr.mxu0 0.0
  %2178 = vmatpush1.msra.mxu0 %v52
  %2179 = vmatprep.subr.mxu0 0.0
  %2180 = vmatpush1.msra.mxu0 %v51
  %2181 = vmatprep.subr.mxu0 0.0
  %2182 = vmatpush1.msra.mxu0 %v50
  %2183 = vmatprep.subr.mxu0 0.0
  %2184 = vmatpush1.msra.mxu0 %v49
  %2185 = vmatprep.subr.mxu0 0.0
  %2186 = vmatpush1.msra.mxu0 %v48
  %2187 = vmatprep.subr.mxu0 0.0
  %2188 = vmatpush1.msra.mxu0 %v47
  %2189 = vmatprep.subr.mxu0 0.0
  %2190 = vmatpush1.msra.mxu0 %v46
  %2191 = vmatprep.subr.mxu0 0.0
  %2192 = vmatpush1.msra.mxu0 %v45
  %2193 = vmatprep.subr.mxu0 0.0
  %2194 = vmatpush1.msra.mxu0 %v44
  %2195 = vmatprep.subr.mxu0 0.0
  %2196 = vmatpush1.msra.mxu0 %v43
  %2197 = vmatprep.subr.mxu0 0.0
  %2198 = vmatpush1.msra.mxu0 %v42
  %2199 = vmatprep.subr.mxu0 0.0
  %2200 = vmatpush2.msra.mxu0 0.0
  %2201 = vmatprep.subr.mxu0 0.0
  %2202 = vmatpush2.msra.mxu0 0.0
  %2203 = vmatprep.subr.mxu0 0.0
  %2204 = vmatpush2.msra.mxu0 0.0
  %2205 = vmatprep.subr.mxu0 0.0
  %2206 = vmatpush2.msra.mxu0 0.0
  %2207 = vmatprep.subr.mxu0 0.0
  %2208 = vmatpush2.msra.mxu0 0.0
  %2209 = vmatprep.subr.mxu0 0.0
  %2210 = vmatpush2.msra.mxu0 0.0
  %2211 = vmatprep.subr.mxu0 0.0
  %2212 = vmatpush2.msra.mxu0 0.0
  %2213 = vmatprep.subr.mxu0 0.0
  %2214 = vmatpush2.msra.mxu0 0.0
  %2215 = vmatprep.subr.mxu0 0.0
  %2216 = vmatpush2.msra.mxu0 0.0
  %2217 = vmatprep.subr.mxu0 0.0
  %2218 = vmatpush2.msra.mxu0 0.0
  %2219 = vmatprep.subr.mxu0 0.0
  %2220 = vmatpush2.msra.mxu0 0.0
  %2221 = vmatprep.subr.mxu0 0.0
  %2222 = vmatpush2.msra.mxu0 0.0
  %2223 = vmatprep.subr.mxu0 0.0
  %2224 = vmatpush2.msra.mxu0 0.0
  %2225 = vmatprep.subr.mxu0 0.0
  %2226 = vmatpush2.msra.mxu0 0.0
  %2227 = vmatprep.subr.mxu0 0.0
  %2228 = vmatpush2.msra.mxu0 0.0
  %2229 = vmatprep.subr.mxu0 0.0
  %2230 = vmatpush2.msra.mxu0 0.0
  %2231 = vmatprep.mubr.f32.mxu0 0.0
  %2232 = vmatmul.mubr.f32.gmra.mxu0 %v2077
  %v2233 = vpop.f32.mrf.mxu0
  %v2234 = vadd.f32 0.0, %v2233
  %v2235 = vpop.f32.mrf.mxu0
  %2236 = vdwg.mxu0
  %2237 = vmatprep.subr.mxu0 0.0
  %2238 = vmatpush1.msra.mxu0 %v73
  %2239 = vmatprep.subr.mxu0 0.0
  %2240 = vmatpush1.msra.mxu0 %v72
  %2241 = vmatprep.subr.mxu0 0.0
  %2242 = vmatpush1.msra.mxu0 %v71
  %2243 = vmatprep.subr.mxu0 0.0
  %2244 = vmatpush1.msra.mxu0 %v70
  %2245 = vmatprep.subr.mxu0 0.0
  %2246 = vmatpush1.msra.mxu0 %v69
  %2247 = vmatprep.subr.mxu0 0.0
  %2248 = vmatpush1.msra.mxu0 %v68
  %2249 = vmatprep.subr.mxu0 0.0
  %2250 = vmatpush1.msra.mxu0 %v67
  %2251 = vmatprep.subr.mxu0 0.0
  %2252 = vmatpush1.msra.mxu0 %v66
  %2253 = vmatprep.subr.mxu0 0.0
  %2254 = vmatpush1.msra.mxu0 %v65
  %2255 = vmatprep.subr.mxu0 0.0
  %2256 = vmatpush1.msra.mxu0 %v64
  %2257 = vmatprep.subr.mxu0 0.0
  %2258 = vmatpush1.msra.mxu0 %v63
  %2259 = vmatprep.subr.mxu0 0.0
  %2260 = vmatpush1.msra.mxu0 %v62
  %2261 = vmatprep.subr.mxu0 0.0
  %2262 = vmatpush1.msra.mxu0 %v61
  %2263 = vmatprep.subr.mxu0 0.0
  %2264 = vmatpush1.msra.mxu0 %v60
  %2265 = vmatprep.subr.mxu0 0.0
  %2266 = vmatpush1.msra.mxu0 %v59
  %2267 = vmatprep.subr.mxu0 0.0
  %2268 = vmatpush1.msra.mxu0 %v58
  %2269 = vmatprep.subr.mxu0 0.0
  %2270 = vmatpush2.msra.mxu0 0.0
  %2271 = vmatprep.subr.mxu0 0.0
  %2272 = vmatpush2.msra.mxu0 0.0
  %2273 = vmatprep.subr.mxu0 0.0
  %2274 = vmatpush2.msra.mxu0 0.0
  %2275 = vmatprep.subr.mxu0 0.0
  %2276 = vmatpush2.msra.mxu0 0.0
  %2277 = vmatprep.subr.mxu0 0.0
  %2278 = vmatpush2.msra.mxu0 0.0
  %2279 = vmatprep.subr.mxu0 0.0
  %2280 = vmatpush2.msra.mxu0 0.0
  %2281 = vmatprep.subr.mxu0 0.0
  %2282 = vmatpush2.msra.mxu0 0.0
  %2283 = vmatprep.subr.mxu0 0.0
  %2284 = vmatpush2.msra.mxu0 0.0
  %2285 = vmatprep.subr.mxu0 0.0
  %2286 = vmatpush2.msra.mxu0 0.0
  %2287 = vmatprep.subr.mxu0 0.0
  %2288 = vmatpush2.msra.mxu0 0.0
  %2289 = vmatprep.subr.mxu0 0.0
  %2290 = vmatpush2.msra.mxu0 0.0
  %2291 = vmatprep.subr.mxu0 0.0
  %2292 = vmatpush2.msra.mxu0 0.0
  %2293 = vmatprep.subr.mxu0 0.0
  %2294 = vmatpush2.msra.mxu0 0.0
  %2295 = vmatprep.subr.mxu0 0.0
  %2296 = vmatpush2.msra.mxu0 0.0
  %2297 = vmatprep.subr.mxu0 0.0
  %2298 = vmatpush2.msra.mxu0 0.0
  %2299 = vmatprep.subr.mxu0 0.0
  %2300 = vmatpush2.msra.mxu0 0.0
  %2301 = vmatprep.mubr.f32.mxu0 0.0
  %2302 = vmatmul.mubr.f32.gmra.mxu0 %v2085
  %v2303 = vpop.f32.mrf.mxu0
  %v2304 = vadd.f32 0.0, %v2303
  %v2305 = vpop.f32.mrf.mxu0
  %2306 = vdwg.mxu0
  %2307 = vmatprep.subr.mxu0 0.0
  %2308 = vmatpush1.msra.mxu0 %v89
  %2309 = vmatprep.subr.mxu0 0.0
  %2310 = vmatpush1.msra.mxu0 %v88
  %2311 = vmatprep.subr.mxu0 0.0
  %2312 = vmatpush1.msra.mxu0 %v87
  %2313 = vmatprep.subr.mxu0 0.0
  %2314 = vmatpush1.msra.mxu0 %v86
  %2315 = vmatprep.subr.mxu0 0.0
  %2316 = vmatpush1.msra.mxu0 %v85
  %2317 = vmatprep.subr.mxu0 0.0
  %2318 = vmatpush1.msra.mxu0 %v84
  %2319 = vmatprep.subr.mxu0 0.0
  %2320 = vmatpush1.msra.mxu0 %v83
  %2321 = vmatprep.subr.mxu0 0.0
  %2322 = vmatpush1.msra.mxu0 %v82
  %2323 = vmatprep.subr.mxu0 0.0
  %2324 = vmatpush1.msra.mxu0 %v81
  %2325 = vmatprep.subr.mxu0 0.0
  %2326 = vmatpush1.msra.mxu0 %v80
  %2327 = vmatprep.subr.mxu0 0.0
  %2328 = vmatpush1.msra.mxu0 %v79
  %2329 = vmatprep.subr.mxu0 0.0
  %2330 = vmatpush1.msra.mxu0 %v78
  %2331 = vmatprep.subr.mxu0 0.0
  %2332 = vmatpush1.msra.mxu0 %v77
  %2333 = vmatprep.subr.mxu0 0.0
  %2334 = vmatpush1.msra.mxu0 %v76
  %2335 = vmatprep.subr.mxu0 0.0
  %2336 = vmatpush1.msra.mxu0 %v75
  %2337 = vmatprep.subr.mxu0 0.0
  %2338 = vmatpush1.msra.mxu0 %v74
  %2339 = vmatprep.subr.mxu0 0.0
  %2340 = vmatpush2.msra.mxu0 0.0
  %2341 = vmatprep.subr.mxu0 0.0
  %2342 = vmatpush2.msra.mxu0 0.0
  %2343 = vmatprep.subr.mxu0 0.0
  %2344 = vmatpush2.msra.mxu0 0.0
  %2345 = vmatprep.subr.mxu0 0.0
  %2346 = vmatpush2.msra.mxu0 0.0
  %2347 = vmatprep.subr.mxu0 0.0
  %2348 = vmatpush2.msra.mxu0 0.0
  %2349 = vmatprep.subr.mxu0 0.0
  %2350 = vmatpush2.msra.mxu0 0.0
  %2351 = vmatprep.subr.mxu0 0.0
  %2352 = vmatpush2.msra.mxu0 0.0
  %2353 = vmatprep.subr.mxu0 0.0
  %2354 = vmatpush2.msra.mxu0 0.0
  %2355 = vmatprep.subr.mxu0 0.0
  %2356 = vmatpush2.msra.mxu0 0.0
  %2357 = vmatprep.subr.mxu0 0.0
  %2358 = vmatpush2.msra.mxu0 0.0
  %2359 = vmatprep.subr.mxu0 0.0
  %2360 = vmatpush2.msra.mxu0 0.0
  %2361 = vmatprep.subr.mxu0 0.0
  %2362 = vmatpush2.msra.mxu0 0.0
  %2363 = vmatprep.subr.mxu0 0.0
  %2364 = vmatpush2.msra.mxu0 0.0
  %2365 = vmatprep.subr.mxu0 0.0
  %2366 = vmatpush2.msra.mxu0 0.0
  %2367 = vmatprep.subr.mxu0 0.0
  %2368 = vmatpush2.msra.mxu0 0.0
  %2369 = vmatprep.subr.mxu0 0.0
  %2370 = vmatpush2.msra.mxu0 0.0
  %2371 = vmatprep.mubr.f32.mxu0 0.0
  %2372 = vmatmul.mubr.f32.gmra.mxu0 %v2087
  %v2373 = vpop.f32.mrf.mxu0
  %v2374 = vadd.f32 0.0, %v2373
  %v2375 = vpop.f32.mrf.mxu0
  %2376 = vdwg.mxu0
  %2377 = vmatprep.subr.mxu0 0.0
  %2378 = vmatpush1.msra.mxu0 %v105
  %2379 = vmatprep.subr.mxu0 0.0
  %2380 = vmatpush1.msra.mxu0 %v104
  %2381 = vmatprep.subr.mxu0 0.0
  %2382 = vmatpush1.msra.mxu0 %v103
  %2383 = vmatprep.subr.mxu0 0.0
  %2384 = vmatpush1.msra.mxu0 %v102
  %2385 = vmatprep.subr.mxu0 0.0
  %2386 = vmatpush1.msra.mxu0 %v101
  %2387 = vmatprep.subr.mxu0 0.0
  %2388 = vmatpush1.msra.mxu0 %v100
  %2389 = vmatprep.subr.mxu0 0.0
  %2390 = vmatpush1.msra.mxu0 %v99
  %2391 = vmatprep.subr.mxu0 0.0
  %2392 = vmatpush1.msra.mxu0 %v98
  %2393 = vmatprep.subr.mxu0 0.0
  %2394 = vmatpush1.msra.mxu0 %v97
  %2395 = vmatprep.subr.mxu0 0.0
  %2396 = vmatpush1.msra.mxu0 %v96
  %2397 = vmatprep.subr.mxu0 0.0
  %2398 = vmatpush1.msra.mxu0 %v95
  %2399 = vmatprep.subr.mxu0 0.0
  %2400 = vmatpush1.msra.mxu0 %v94
  %2401 = vmatprep.subr.mxu0 0.0
  %2402 = vmatpush1.msra.mxu0 %v93
  %2403 = vmatprep.subr.mxu0 0.0
  %2404 = vmatpush1.msra.mxu0 %v92
  %2405 = vmatprep.subr.mxu0 0.0
  %2406 = vmatpush1.msra.mxu0 %v91
  %2407 = vmatprep.subr.mxu0 0.0
  %2408 = vmatpush1.msra.mxu0 %v90
  %2409 = vmatprep.subr.mxu0 0.0
  %2410 = vmatpush2.msra.mxu0 0.0
  %2411 = vmatprep.subr.mxu0 0.0
  %2412 = vmatpush2.msra.mxu0 0.0
  %2413 = vmatprep.subr.mxu0 0.0
  %2414 = vmatpush2.msra.mxu0 0.0
  %2415 = vmatprep.subr.mxu0 0.0
  %2416 = vmatpush2.msra.mxu0 0.0
  %2417 = vmatprep.subr.mxu0 0.0
  %2418 = vmatpush2.msra.mxu0 0.0
  %2419 = vmatprep.subr.mxu0 0.0
  %2420 = vmatpush2.msra.mxu0 0.0
  %2421 = vmatprep.subr.mxu0 0.0
  %2422 = vmatpush2.msra.mxu0 0.0
  %2423 = vmatprep.subr.mxu0 0.0
  %2424 = vmatpush2.msra.mxu0 0.0
  %2425 = vmatprep.subr.mxu0 0.0
  %2426 = vmatpush2.msra.mxu0 0.0
  %2427 = vmatprep.subr.mxu0 0.0
  %2428 = vmatpush2.msra.mxu0 0.0
  %2429 = vmatprep.subr.mxu0 0.0
  %2430 = vmatpush2.msra.mxu0 0.0
  %2431 = vmatprep.subr.mxu0 0.0
  %2432 = vmatpush2.msra.mxu0 0.0
  %2433 = vmatprep.subr.mxu0 0.0
  %2434 = vmatpush2.msra.mxu0 0.0
  %2435 = vmatprep.subr.mxu0 0.0
  %2436 = vmatpush2.msra.mxu0 0.0
  %2437 = vmatprep.subr.mxu0 0.0
  %2438 = vmatpush2.msra.mxu0 0.0
  %2439 = vmatprep.subr.mxu0 0.0
  %2440 = vmatpush2.msra.mxu0 0.0
  %2441 = vmatprep.mubr.f32.mxu0 0.0
  %2442 = vmatmul.mubr.f32.gmra.mxu0 %v2070
  %v2443 = vpop.f32.mrf.mxu0
  %v2444 = vadd.f32 0.0, %v2443
  %v2445 = vpop.f32.mrf.mxu0
  %2446 = vdwg.mxu0
  %2447 = vmatprep.subr.mxu0 0.0
  %2448 = vmatpush1.msra.mxu0 %v121
  %2449 = vmatprep.subr.mxu0 0.0
  %2450 = vmatpush1.msra.mxu0 %v120
  %2451 = vmatprep.subr.mxu0 0.0
  %2452 = vmatpush1.msra.mxu0 %v119
  %2453 = vmatprep.subr.mxu0 0.0
  %2454 = vmatpush1.msra.mxu0 %v118
  %2455 = vmatprep.subr.mxu0 0.0
  %2456 = vmatpush1.msra.mxu0 %v117
  %2457 = vmatprep.subr.mxu0 0.0
  %2458 = vmatpush1.msra.mxu0 %v116
  %2459 = vmatprep.subr.mxu0 0.0
  %2460 = vmatpush1.msra.mxu0 %v115
  %2461 = vmatprep.subr.mxu0 0.0
  %2462 = vmatpush1.msra.mxu0 %v114
  %2463 = vmatprep.subr.mxu0 0.0
  %2464 = vmatpush1.msra.mxu0 %v113
  %2465 = vmatprep.subr.mxu0 0.0
  %2466 = vmatpush1.msra.mxu0 %v112
  %2467 = vmatprep.subr.mxu0 0.0
  %2468 = vmatpush1.msra.mxu0 %v111
  %2469 = vmatprep.subr.mxu0 0.0
  %2470 = vmatpush1.msra.mxu0 %v110
  %2471 = vmatprep.subr.mxu0 0.0
  %2472 = vmatpush1.msra.mxu0 %v109
  %2473 = vmatprep.subr.mxu0 0.0
  %2474 = vmatpush1.msra.mxu0 %v108
  %2475 = vmatprep.subr.mxu0 0.0
  %2476 = vmatpush1.msra.mxu0 %v107
  %2477 = vmatprep.subr.mxu0 0.0
  %2478 = vmatpush1.msra.mxu0 %v106
  %2479 = vmatprep.subr.mxu0 0.0
  %2480 = vmatpush2.msra.mxu0 0.0
  %2481 = vmatprep.subr.mxu0 0.0
  %2482 = vmatpush2.msra.mxu0 0.0
  %2483 = vmatprep.subr.mxu0 0.0
  %2484 = vmatpush2.msra.mxu0 0.0
  %2485 = vmatprep.subr.mxu0 0.0
  %2486 = vmatpush2.msra.mxu0 0.0
  %2487 = vmatprep.subr.mxu0 0.0
  %2488 = vmatpush2.msra.mxu0 0.0
  %2489 = vmatprep.subr.mxu0 0.0
  %2490 = vmatpush2.msra.mxu0 0.0
  %2491 = vmatprep.subr.mxu0 0.0
  %2492 = vmatpush2.msra.mxu0 0.0
  %2493 = vmatprep.subr.mxu0 0.0
  %2494 = vmatpush2.msra.mxu0 0.0
  %2495 = vmatprep.subr.mxu0 0.0
  %2496 = vmatpush2.msra.mxu0 0.0
  %2497 = vmatprep.subr.mxu0 0.0
  %2498 = vmatpush2.msra.mxu0 0.0
  %2499 = vmatprep.subr.mxu0 0.0
  %2500 = vmatpush2.msra.mxu0 0.0
  %2501 = vmatprep.subr.mxu0 0.0
  %2502 = vmatpush2.msra.mxu0 0.0
  %2503 = vmatprep.subr.mxu0 0.0
  %2504 = vmatpush2.msra.mxu0 0.0
  %2505 = vmatprep.subr.mxu0 0.0
  %2506 = vmatpush2.msra.mxu0 0.0
  %2507 = vmatprep.subr.mxu0 0.0
  %2508 = vmatpush2.msra.mxu0 0.0
  %2509 = vmatprep.subr.mxu0 0.0
  %2510 = vmatpush2.msra.mxu0 0.0
  %2511 = vmatprep.mubr.f32.mxu0 0.0
  %2512 = vmatmul.mubr.f32.gmra.mxu0 %v2084
  %v2513 = vpop.f32.mrf.mxu0
  %v2514 = vadd.f32 0.0, %v2513
  %v2515 = vpop.f32.mrf.mxu0
  %2516 = vdwg.mxu0
  %2517 = vmatprep.subr.mxu0 0.0
  %2518 = vmatpush1.msra.mxu0 %v137
  %2519 = vmatprep.subr.mxu0 0.0
  %2520 = vmatpush1.msra.mxu0 %v136
  %2521 = vmatprep.subr.mxu0 0.0
  %2522 = vmatpush1.msra.mxu0 %v135
  %2523 = vmatprep.subr.mxu0 0.0
  %2524 = vmatpush1.msra.mxu0 %v134
  %2525 = vmatprep.subr.mxu0 0.0
  %2526 = vmatpush1.msra.mxu0 %v133
  %2527 = vmatprep.subr.mxu0 0.0
  %2528 = vmatpush1.msra.mxu0 %v132
  %2529 = vmatprep.subr.mxu0 0.0
  %2530 = vmatpush1.msra.mxu0 %v131
  %2531 = vmatprep.subr.mxu0 0.0
  %2532 = vmatpush1.msra.mxu0 %v130
  %2533 = vmatprep.subr.mxu0 0.0
  %2534 = vmatpush1.msra.mxu0 %v129
  %2535 = vmatprep.subr.mxu0 0.0
  %2536 = vmatpush1.msra.mxu0 %v128
  %2537 = vmatprep.subr.mxu0 0.0
  %2538 = vmatpush1.msra.mxu0 %v127
  %2539 = vmatprep.subr.mxu0 0.0
  %2540 = vmatpush1.msra.mxu0 %v126
  %2541 = vmatprep.subr.mxu0 0.0
  %2542 = vmatpush1.msra.mxu0 %v125
  %2543 = vmatprep.subr.mxu0 0.0
  %2544 = vmatpush1.msra.mxu0 %v124
  %2545 = vmatprep.subr.mxu0 0.0
  %2546 = vmatpush1.msra.mxu0 %v123
  %2547 = vmatprep.subr.mxu0 0.0
  %2548 = vmatpush1.msra.mxu0 %v122
  %2549 = vmatprep.subr.mxu0 0.0
  %2550 = vmatpush2.msra.mxu0 0.0
  %2551 = vmatprep.subr.mxu0 0.0
  %2552 = vmatpush2.msra.mxu0 0.0
  %2553 = vmatprep.subr.mxu0 0.0
  %2554 = vmatpush2.msra.mxu0 0.0
  %2555 = vmatprep.subr.mxu0 0.0
  %2556 = vmatpush2.msra.mxu0 0.0
  %2557 = vmatprep.subr.mxu0 0.0
  %2558 = vmatpush2.msra.mxu0 0.0
  %2559 = vmatprep.subr.mxu0 0.0
  %2560 = vmatpush2.msra.mxu0 0.0
  %2561 = vmatprep.subr.mxu0 0.0
  %2562 = vmatpush2.msra.mxu0 0.0
  %2563 = vmatprep.subr.mxu0 0.0
  %2564 = vmatpush2.msra.mxu0 0.0
  %2565 = vmatprep.subr.mxu0 0.0
  %2566 = vmatpush2.msra.mxu0 0.0
  %2567 = vmatprep.subr.mxu0 0.0
  %2568 = vmatpush2.msra.mxu0 0.0
  %2569 = vmatprep.subr.mxu0 0.0
  %2570 = vmatpush2.msra.mxu0 0.0
  %2571 = vmatprep.subr.mxu0 0.0
  %2572 = vmatpush2.msra.mxu0 0.0
  %2573 = vmatprep.subr.mxu0 0.0
  %2574 = vmatpush2.msra.mxu0 0.0
  %2575 = vmatprep.subr.mxu0 0.0
  %2576 = vmatpush2.msra.mxu0 0.0
  %2577 = vmatprep.subr.mxu0 0.0
  %2578 = vmatpush2.msra.mxu0 0.0
  %2579 = vmatprep.subr.mxu0 0.0
  %2580 = vmatpush2.msra.mxu0 0.0
  %2581 = vmatprep.mubr.f32.mxu0 0.0
  %2582 = vmatmul.mubr.f32.gmra.mxu0 %v2086
  %v2583 = vpop.f32.mrf.mxu0
  %v2584 = vadd.f32 0.0, %v2583
  %v2585 = vpop.f32.mrf.mxu0
  %2586 = vdwg.mxu0
  %2587 = vmatprep.subr.mxu0 0.0
  %2588 = vmatpush1.msra.mxu0 %v153
  %2589 = vmatprep.subr.mxu0 0.0
  %2590 = vmatpush1.msra.mxu0 %v152
  %2591 = vmatprep.subr.mxu0 0.0
  %2592 = vmatpush1.msra.mxu0 %v151
  %2593 = vmatprep.subr.mxu0 0.0
  %2594 = vmatpush1.msra.mxu0 %v150
  %2595 = vmatprep.subr.mxu0 0.0
  %2596 = vmatpush1.msra.mxu0 %v149
  %2597 = vmatprep.subr.mxu0 0.0
  %2598 = vmatpush1.msra.mxu0 %v148
  %2599 = vmatprep.subr.mxu0 0.0
  %2600 = vmatpush1.msra.mxu0 %v147
  %2601 = vmatprep.subr.mxu0 0.0
  %2602 = vmatpush1.msra.mxu0 %v146
  %2603 = vmatprep.subr.mxu0 0.0
  %2604 = vmatpush1.msra.mxu0 %v145
  %2605 = vmatprep.subr.mxu0 0.0
  %2606 = vmatpush1.msra.mxu0 %v144
  %2607 = vmatprep.subr.mxu0 0.0
  %2608 = vmatpush1.msra.mxu0 %v143
  %2609 = vmatprep.subr.mxu0 0.0
  %2610 = vmatpush1.msra.mxu0 %v142
  %2611 = vmatprep.subr.mxu0 0.0
  %2612 = vmatpush1.msra.mxu0 %v141
  %2613 = vmatprep.subr.mxu0 0.0
  %2614 = vmatpush1.msra.mxu0 %v140
  %2615 = vmatprep.subr.mxu0 0.0
  %2616 = vmatpush1.msra.mxu0 %v139
  %2617 = vmatprep.subr.mxu0 0.0
  %2618 = vmatpush1.msra.mxu0 %v138
  %2619 = vmatprep.subr.mxu0 0.0
  %2620 = vmatpush2.msra.mxu0 0.0
  %2621 = vmatprep.subr.mxu0 0.0
  %2622 = vmatpush2.msra.mxu0 0.0
  %2623 = vmatprep.subr.mxu0 0.0
  %2624 = vmatpush2.msra.mxu0 0.0
  %2625 = vmatprep.subr.mxu0 0.0
  %2626 = vmatpush2.msra.mxu0 0.0
  %2627 = vmatprep.subr.mxu0 0.0
  %2628 = vmatpush2.msra.mxu0 0.0
  %2629 = vmatprep.subr.mxu0 0.0
  %2630 = vmatpush2.msra.mxu0 0.0
  %2631 = vmatprep.subr.mxu0 0.0
  %2632 = vmatpush2.msra.mxu0 0.0
  %2633 = vmatprep.subr.mxu0 0.0
  %2634 = vmatpush2.msra.mxu0 0.0
  %2635 = vmatprep.subr.mxu0 0.0
  %2636 = vmatpush2.msra.mxu0 0.0
  %2637 = vmatprep.subr.mxu0 0.0
  %2638 = vmatpush2.msra.mxu0 0.0
  %2639 = vmatprep.subr.mxu0 0.0
  %2640 = vmatpush2.msra.mxu0 0.0
  %2641 = vmatprep.subr.mxu0 0.0
  %2642 = vmatpush2.msra.mxu0 0.0
  %2643 = vmatprep.subr.mxu0 0.0
  %2644 = vmatpush2.msra.mxu0 0.0
  %2645 = vmatprep.subr.mxu0 0.0
  %2646 = vmatpush2.msra.mxu0 0.0
  %2647 = vmatprep.subr.mxu0 0.0
  %2648 = vmatpush2.msra.mxu0 0.0
  %2649 = vmatprep.subr.mxu0 0.0
  %2650 = vmatpush2.msra.mxu0 0.0
  %2651 = vmatprep.mubr.f32.mxu0 0.0
  %2652 = vmatmul.mubr.f32.gmra.mxu0 %v2088
  %v2653 = vpop.f32.mrf.mxu0
  %v2654 = vadd.f32 0.0, %v2653
  %v2655 = vpop.f32.mrf.mxu0
  %2656 = vdwg.mxu0
  %v2657 = vld [vmem:[%s4] sm:$0xff]
  %v2658 = vld [vmem:[%s4 + $0x8] sm:$0xff]
  %v2659 = vld [vmem:[%s4 + $0x10] sm:$0xff]
  %v2660 = vld [vmem:[%s4 + $0x18] sm:$0xff]
  %v2661 = vld [vmem:[%s4 + $0x20] sm:$0xff]
  %v2662 = vld [vmem:[%s4 + $0x28] sm:$0xff]
  %v2663 = vld [vmem:[%s5] sm:$0xff]
  %v2664 = vld [vmem:[%s5 + $0x8] sm:$0xff]
  %v2665 = vld [vmem:[%s5 + $0x10] sm:$0xff]
  %v2666 = vld [vmem:[%s5 + $0x18] sm:$0xff]
  %2667 = vmatprep.subr.mxu0 0.0
  %2668 = vmatpush1.msra.mxu0 0.0
  %2669 = vmatprep.subr.mxu0 0.0
  %2670 = vmatpush1.msra.mxu0 0.0
  %2671 = vmatprep.subr.mxu0 0.0
  %2672 = vmatpush1.msra.mxu0 0.0
  %2673 = vmatprep.subr.mxu0 0.0
  %2674 = vmatpush1.msra.mxu0 0.0
  %2675 = vmatprep.subr.mxu0 0.0
  %2676 = vmatpush1.msra.mxu0 0.0
  %2677 = vmatprep.subr.mxu0 0.0
  %2678 = vmatpush1.msra.mxu0 0.0
  %2679 = vmatprep.subr.mxu0 0.0
  %2680 = vmatpush1.msra.mxu0 0.0
  %2681 = vmatprep.subr.mxu0 0.0
  %2682 = vmatpush1.msra.mxu0 0.0
  %2683 = vmatprep.subr.mxu0 0.0
  %2684 = vmatpush1.msra.mxu0 0.0
  %2685 = vmatprep.subr.mxu0 0.0
  %2686 = vmatpush1.msra.mxu0 0.0
  %2687 = vmatprep.subr.mxu0 0.0
  %2688 = vmatpush1.msra.mxu0 0.0
  %2689 = vmatprep.subr.mxu0 0.0
  %2690 = vmatpush1.msra.mxu0 0.0
  %2691 = vmatprep.subr.mxu0 0.0
  %2692 = vmatpush1.msra.mxu0 %v2666
  %2693 = vmatprep.subr.mxu0 0.0
  %2694 = vmatpush1.msra.mxu0 %v2665
  %2695 = vmatprep.subr.mxu0 0.0
  %2696 = vmatpush1.msra.mxu0 %v2664
  %2697 = vmatprep.subr.mxu0 0.0
  %2698 = vmatpush1.msra.mxu0 %v2663
  %2699 = vmatprep.subr.mxu0 0.0
  %2700 = vmatpush2.msra.mxu0 0.0
  %2701 = vmatprep.subr.mxu0 0.0
  %2702 = vmatpush2.msra.mxu0 0.0
  %2703 = vmatprep.subr.mxu0 0.0
  %2704 = vmatpush2.msra.mxu0 0.0
  %2705 = vmatprep.subr.mxu0 0.0
  %2706 = vmatpush2.msra.mxu0 0.0
  %2707 = vmatprep.subr.mxu0 0.0
  %2708 = vmatpush2.msra.mxu0 0.0
  %2709 = vmatprep.subr.mxu0 0.0
  %2710 = vmatpush2.msra.mxu0 0.0
  %2711 = vmatprep.subr.mxu0 0.0
  %2712 = vmatpush2.msra.mxu0 0.0
  %2713 = vmatprep.subr.mxu0 0.0
  %2714 = vmatpush2.msra.mxu0 0.0
  %2715 = vmatprep.subr.mxu0 0.0
  %2716 = vmatpush2.msra.mxu0 0.0
  %2717 = vmatprep.subr.mxu0 0.0
  %2718 = vmatpush2.msra.mxu0 0.0
  %2719 = vmatprep.subr.mxu0 0.0
  %2720 = vmatpush2.msra.mxu0 0.0
  %2721 = vmatprep.subr.mxu0 0.0
  %2722 = vmatpush2.msra.mxu0 0.0
  %2723 = vmatprep.subr.mxu0 0.0
  %2724 = vmatpush2.msra.mxu0 0.0
  %2725 = vmatprep.subr.mxu0 0.0
  %2726 = vmatpush2.msra.mxu0 0.0
  %2727 = vmatprep.subr.mxu0 0.0
  %2728 = vmatpush2.msra.mxu0 0.0
  %2729 = vmatprep.subr.mxu0 0.0
  %2730 = vmatpush2.msra.mxu0 0.0
  %2731 = vmatprep.mubr.f32.mxu0 0.0
  %2732 = vmatmul.mubr.f32.gmra.mxu0 %v161
  %v2733 = vpop.f32.mrf.mxu0
  %v2734 = vadd.f32 0.0, %v2733
  %v2735 = vpop.f32.mrf.mxu0
  %2736 = vdwg.mxu0
  %v2745 = vrot.slane %v2234, 7
  %v2746 = vsel %vm2013, %v2745, %v2164
  %v2747 = vrot.slane %v2304, 6
  %v2748 = vsel %vm2015, %v2747, %v2746
  %v2749 = vrot.slane %v2374, 5
  %v2750 = vsel %vm2017, %v2749, %v2748
  %v2751 = vrot.slane %v2444, 4
  %v2752 = vsel %vm2019, %v2751, %v2750
  %v2753 = vrot.slane %v2514, 3
  %v2754 = vsel %vm2021, %v2753, %v2752
  %v2755 = vrot.slane %v2584, 2
  %v2756 = vsel %vm2023, %v2755, %v2754
  %v2757 = vrot.slane %v2654, 1
  %v2758 = vsel %vm2025, %v2757, %v2756
  %v2759 = vsel %vm304, %v2758, 0
  %2761 = vmatprep.subr.mxu0 0.0
  %2762 = vmatpush1.msra.mxu0 0.0
  %2763 = vmatprep.subr.mxu0 0.0
  %2764 = vmatpush1.msra.mxu0 0.0
  %2765 = vmatprep.subr.mxu0 0.0
  %2766 = vmatpush1.msra.mxu0 0.0
  %2767 = vmatprep.subr.mxu0 0.0
  %2768 = vmatpush1.msra.mxu0 0.0
  %2769 = vmatprep.subr.mxu0 0.0
  %2770 = vmatpush1.msra.mxu0 0.0
  %2771 = vmatprep.subr.mxu0 0.0
  %2772 = vmatpush1.msra.mxu0 0.0
  %2773 = vmatprep.subr.mxu0 0.0
  %2774 = vmatpush1.msra.mxu0 0.0
  %2775 = vmatprep.subr.mxu0 0.0
  %2776 = vmatpush1.msra.mxu0 0.0
  %2777 = vmatprep.subr.mxu0 0.0
  %2778 = vmatpush1.msra.mxu0 0.0
  %2779 = vmatprep.subr.mxu0 0.0
  %2780 = vmatpush1.msra.mxu0 0.0
  %2781 = vmatprep.subr.mxu0 0.0
  %2782 = vmatpush1.msra.mxu0 %v2662
  %2783 = vmatprep.subr.mxu0 0.0
  %2784 = vmatpush1.msra.mxu0 %v2661
  %2785 = vmatprep.subr.mxu0 0.0
  %2786 = vmatpush1.msra.mxu0 %v2660
  %2787 = vmatprep.subr.mxu0 0.0
  %2788 = vmatpush1.msra.mxu0 %v2659
  %2789 = vmatprep.subr.mxu0 0.0
  %2790 = vmatpush1.msra.mxu0 %v2658
  %2791 = vmatprep.subr.mxu0 0.0
  %2792 = vmatpush1.msra.mxu0 %v2657
  %2793 = vmatprep.subr.mxu0 0.0
  %2794 = vmatpush2.msra.mxu0 0.0
  %2795 = vmatprep.subr.mxu0 0.0
  %2796 = vmatpush2.msra.mxu0 0.0
  %2797 = vmatprep.subr.mxu0 0.0
  %2798 = vmatpush2.msra.mxu0 0.0
  %2799 = vmatprep.subr.mxu0 0.0
  %2800 = vmatpush2.msra.mxu0 0.0
  %2801 = vmatprep.subr.mxu0 0.0
  %2802 = vmatpush2.msra.mxu0 0.0
  %2803 = vmatprep.subr.mxu0 0.0
  %2804 = vmatpush2.msra.mxu0 0.0
  %2805 = vmatprep.subr.mxu0 0.0
  %2806 = vmatpush2.msra.mxu0 0.0
  %2807 = vmatprep.subr.mxu0 0.0
  %2808 = vmatpush2.msra.mxu0 0.0
  %2809 = vmatprep.subr.mxu0 0.0
  %2810 = vmatpush2.msra.mxu0 0.0
  %2811 = vmatprep.subr.mxu0 0.0
  %2812 = vmatpush2.msra.mxu0 0.0
  %2813 = vmatprep.subr.mxu0 0.0
  %2814 = vmatpush2.msra.mxu0 0.0
  %2815 = vmatprep.subr.mxu0 0.0
  %2816 = vmatpush2.msra.mxu0 0.0
  %2817 = vmatprep.subr.mxu0 0.0
  %2818 = vmatpush2.msra.mxu0 0.0
  %2819 = vmatprep.subr.mxu0 0.0
  %2820 = vmatpush2.msra.mxu0 0.0
  %2821 = vmatprep.subr.mxu0 0.0
  %2822 = vmatpush2.msra.mxu0 0.0
  %2823 = vmatprep.subr.mxu0 0.0
  %2824 = vmatpush2.msra.mxu0 0.0
  %2825 = vmatprep.mubr.f32.mxu0 0.0
  %2826 = vmatmul.mubr.f32.gmra.mxu0 %v2759
  %v2827 = vpop.f32.mrf.mxu0
  %v2828 = vadd.f32 %v2734, %v2827
  %v2829 = vpop.f32.mrf.mxu0
  %2830 = vdwg.mxu0
  %v2831 = vtanh.pop %v2828
  %2832 = vst [vmem:[%s6] sm:$0xff] %v2831
  // Predicated region
  $region26: #{_soft_dot_attention_padded.1} parent=0 // pred_check
    _
  $region27: #{_soft_dot_attention_padded.1} parent=0 // pred_check_branch
    %2834 = sbr.rel (0) target = $region29
  $region28: #{_soft_dot_attention_padded.1} parent=0 // pred_region
    _
  $region29: #{_soft_dot_attention_padded.1} parent=0 // pred_fallthru
    _
  // Predicated region
  $region30: #{_soft_dot_attention_padded.1} parent=0 // pred_check
    _
  $region31: #{_soft_dot_attention_padded.1} parent=0 // pred_check_branch
    %2836 = sbr.rel (0) target = $region33
  $region32: #{_soft_dot_attention_padded.1} parent=0 // pred_region
    _
  $region33: #{_soft_dot_attention_padded.1} parent=0 // pred_fallthru
    _
  // Predicated region
  $region34: #{_soft_dot_attention_padded.1} parent=0 // pred_check
    _
  $region35: #{_soft_dot_attention_padded.1} parent=0 // pred_check_branch
    %2838 = sbr.rel (0) target = $region37
  $region36: #{_soft_dot_attention_padded.1} parent=0 // pred_region
    _
  $region37: #{_soft_dot_attention_padded.1} parent=0 // pred_fallthru
    _
  // Predicated region
  $region38: #{_soft_dot_attention_padded.1} parent=0 // pred_check
    _
  $region39: #{_soft_dot_attention_padded.1} parent=0 // pred_check_branch
    %2840 = sbr.rel (0) target = $region41
  $region40: #{_soft_dot_attention_padded.1} parent=0 // pred_region
    _
  $region41: #{_soft_dot_attention_padded.1} parent=0 // pred_fallthru
    _

</llo_original>
